<compile_context>
chip_gen: v5e
topology: v5e:2x2
jax: 0.10.0
libtpu: 0.0.40
codegen_flags: <defaults>
</compile_context>

<pallas_src>
import numpy as np
import jax
import jax.numpy as jnp
from jax.experimental import pallas as pl
from jax.experimental.pallas import tpu as pltpu


NUM_LAYERS = 8


def _round_up(a, m):
    return (a + m - 1) // m * m


def _make_kernel(input_dim):
    """Kernel closure over the static true input/output feature width."""
    hi = jax.lax.Precision.HIGHEST
    f32 = jnp.float32

    def kernel(x_ref, w_ref, b_ref, out_ref):
        # x_ref:   (input_dim, bt)  batch-on-lanes input tile
        # w_ref:   (8, F, F)        packed weights, PyTorch (out, in) orientation
        # b_ref:   (8, F, 1)        packed biases (column vectors, broadcast on lanes)
        # out_ref: (input_dim, bt)  reconstruction tile
        def lin(h, l):
            return (jnp.dot(w_ref[l], h, precision=hi, preferred_element_type=f32)
                    + b_ref[l])

        x = x_ref[...].astype(f32)

        # encode  (layer 0 contracts only over the true K = input_dim)
        h = jnp.tanh(jnp.dot(w_ref[0][:, :input_dim], x, precision=hi,
                             preferred_element_type=f32) + b_ref[0])
        h = h + jnp.tanh(lin(h, 1))
        h = h + jnp.tanh(lin(h, 2))
        z = lin(h, 3)

        # decode  (layer 7 emits only the true input_dim output rows)
        h = jnp.tanh(lin(z, 4))
        h = h + jnp.tanh(lin(h, 5))
        h = h + jnp.tanh(lin(h, 6))
        y = (jnp.dot(w_ref[7][:input_dim, :], h, precision=hi,
                     preferred_element_type=f32) + b_ref[7][:input_dim])

        out_ref[...] = y.astype(out_ref.dtype)

    return kernel


def pack_params(params):
    """Pack the 8 (w, b) pairs ONCE at init (hoisted out of the forward path).

    params[l] = (w, b) with w: (in_features, out_features), b: (out_features,).
    Packed as W: (8, F, F) in PyTorch (out, in) orientation and b: (8, F, 1),
    with F = round_up(max feature dim, 8).  Zero padding is exact: padded weight
    rows/cols and bias entries are zero, so padded activation rows stay zero
    through tanh / residual adds and are never read back.
    NOTE: a single shared F is optimal when hidden_dim >= input_dim (the usual
    HNN configuration); per-layer widths would be tighter otherwise.
    """
    assert len(params) == NUM_LAYERS
    dims = set()
    for w, _ in params:
        dims.update(int(d) for d in w.shape)
    F = _round_up(max(dims), 8)

    w_np = np.zeros((NUM_LAYERS, F, F), np.float32)
    b_np = np.zeros((NUM_LAYERS, F, 1), np.float32)
    for l, (w, b) in enumerate(params):
        fi, fo = w.shape
        w_np[l, :fo, :fi] = np.asarray(w, np.float32).T          # (out, in)
        b_np[l, :fo, 0] = np.asarray(b, np.float32).reshape(-1)
    return jnp.asarray(w_np), jnp.asarray(b_np)


def mlp_autoencoder_forward(x, packed, *, batch_tile=2048):
    """Fused forward of MLPAutoencoder.

    x: (B, input_dim) float32.  packed: (w_packed, b_packed) from pack_params().
    """
    w_packed, b_packed = packed
    B, input_dim = x.shape
    F = int(w_packed.shape[-1])
    assert input_dim <= F

    # Batch tile: multiple of 128 (the batch lives on the lane axis).  Prefer
    # >= 2 grid steps so both v7x TensorCores get work whenever B allows it.
    b128 = _round_up(B, 128)
    bt = min(_round_up(batch_tile, 128), b128)
    if b128 // bt < 2 and b128 >= 256:
        bt = _round_up((B + 1) // 2, 128)
    B_pad = _round_up(B, bt)
    grid = (B_pad // bt,)

    # Batch-on-lanes input: (input_dim, B_pad).  Pure transpose + batch zero-pad
    # of a tiny array -- no feature-lane padding, no HBM amplification.
    x_t = jnp.pad(x.T.astype(jnp.float32), ((0, 0), (0, B_pad - B)))

    out_t = pl.pallas_call(
        _make_kernel(input_dim),
        out_shape=jax.ShapeDtypeStruct((input_dim, B_pad), x.dtype),
        grid_spec=pltpu.PrefetchScalarGridSpec(
            num_scalar_prefetch=0,
            grid=grid,
            in_specs=[
                pl.BlockSpec((input_dim, bt), lambda i: (0, i)),         # x tile
                pl.BlockSpec((NUM_LAYERS, F, F), lambda i: (0, 0, 0)),   # packed W (tiny, resident)
                pl.BlockSpec((NUM_LAYERS, F, 1), lambda i: (0, 0, 0)),   # packed b
            ],
            out_specs=pl.BlockSpec((input_dim, bt), lambda i: (0, i)),
        ),
        compiler_params=pltpu.CompilerParams(
            dimension_semantics=("parallel",),
        ),
    )(x_t, w_packed, b_packed)

    # Drop batch padding, back to the natural (B, input_dim) layout.
    return out_t[:, :B].T


def make_params(key, input_dim, hidden_dim, latent_dim):
    """Parameter init mirroring the PyTorch module's shapes.

    PyTorch layer l has weight (out, in) orthogonally initialized; we store the
    transpose (in, out). Biases use PyTorch's default U(-1/sqrt(in), 1/sqrt(in)).
    """
    layer_dims = [
        (input_dim, hidden_dim),   # linear1
        (hidden_dim, hidden_dim),  # linear2
        (hidden_dim, hidden_dim),  # linear3
        (hidden_dim, latent_dim),  # linear4
        (latent_dim, hidden_dim),  # linear5
        (hidden_dim, hidden_dim),  # linear6
        (hidden_dim, hidden_dim),  # linear7
        (hidden_dim, input_dim),   # linear8
    ]
    orth = jax.nn.initializers.orthogonal()
    params = []
    for (fan_in, fan_out) in layer_dims:
        key, kw, kb = jax.random.split(key, 3)
        w_t = orth(kw, (fan_out, fan_in), jnp.float32).T   # stored as (in, out)
        bound = 1.0 / np.sqrt(fan_in)
        b = jax.random.uniform(kb, (fan_out,), jnp.float32, -bound, bound)
        params.append((w_t, b))
    return params


def mlp_autoencoder_ref(x, params):
    """Pure-JAX reference of the PyTorch forward (HIGHEST-precision f32 matmuls)."""
    hi = jax.lax.Precision.HIGHEST

    def lin(h, p):
        w, b = p
        return jnp.dot(h, w, precision=hi) + b

    h = jnp.tanh(lin(x, params[0]))
    h = h + jnp.tanh(lin(h, params[1]))
    h = h + jnp.tanh(lin(h, params[2]))
    z = lin(h, params[3])
    h = jnp.tanh(lin(z, params[4]))
    h = h + jnp.tanh(lin(h, params[5]))
    h = h + jnp.tanh(lin(h, params[6]))
    return lin(h, params[7])


if __name__ == "__main__":
    input_dim, hidden_dim, latent_dim = 16, 32, 8
    batch = 256   # small, but enough for a 2-step "parallel" grid (both v7x TCs)

    key = jax.random.PRNGKey(0)
    key, kx = jax.random.split(key)
    x = jax.random.normal(kx, (batch, input_dim), jnp.float32)

    params = make_params(key, input_dim, hidden_dim, latent_dim)
    packed = pack_params(params)   # packed once at init, reused across calls

    # Main path.
    out = mlp_autoencoder_forward(x, packed)
    out = jax.block_until_ready(out)
    ref = mlp_autoencoder_ref(x, params)
    assert out.shape == (batch, input_dim)
    assert jnp.allclose(out, ref, atol=1e-5, rtol=1e-5), "mismatch vs reference"

    # Tail path: batch not a multiple of the tile (exercises wrapper-side padding).
    out_small = mlp_autoencoder_forward(x[:37], packed)
    out_small = jax.block_until_ready(out_small)
    assert out_small.shape == (37, input_dim)
    assert jnp.allclose(out_small, ref[:37], atol=1e-5, rtol=1e-5), "tail mismatch"

    print("KERNEL_OK")
</pallas_src>

<mosaic_0001>
module attributes {stable_mosaic.version = 11 : i64} {
  func.func @kernel(%arg0: i32, %arg1: memref<16x128xf32, #tpu.memory_space<vmem>>, %arg2: memref<8x32x32xf32, #tpu.memory_space<vmem>>, %arg3: memref<8x32x1xf32, #tpu.memory_space<vmem>>, %arg4: memref<16x128xf32, #tpu.memory_space<vmem>>) attributes {dimension_semantics = [#tpu.dimension_semantics<parallel>], iteration_bounds = array<i64: 2>, scalar_prefetch = 0 : i64, scratch_operands = 0 : i64, tpu.core_type = #tpu.core_type<tc>, window_params = [{transform_indices = @transform_0, window_bounds = array<i64: 16, 128>}, {pipeline_mode = #tpu.pipeline_mode<synchronous>, transform_indices = @transform_1, window_bounds = array<i64: 8, 32, 32>}, {pipeline_mode = #tpu.pipeline_mode<synchronous>, transform_indices = @transform_2, window_bounds = array<i64: 8, 32, 1>}, {transform_indices = @transform_3, window_bounds = array<i64: 16, 128>}]} {
    %c0 = arith.constant 0 : index
    %c0_0 = arith.constant 0 : index
    %0 = vector.load %arg1[%c0, %c0_0] : memref<16x128xf32, #tpu.memory_space<vmem>>, vector<16x128xf32>
    %c0_1 = arith.constant 0 : index
    %c0_2 = arith.constant 0 : index
    %c0_3 = arith.constant 0 : index
    %1 = vector.load %arg2[%c0_1, %c0_2, %c0_3] : memref<8x32x32xf32, #tpu.memory_space<vmem>>, vector<1x32x32xf32>
    %2 = vector.shape_cast %1 : vector<1x32x32xf32> to vector<32x32xf32>
    %3 = vector.extract_strided_slice %2 {offsets = [0, 0], sizes = [32, 16], strides = [1, 1]} : vector<32x32xf32> to vector<32x16xf32>
    %cst = arith.constant dense<0.000000e+00> : vector<32x128xf32>
    %4 = tpu.matmul %3, %0, %cst {dimension_numbers = #tpu.dot_dimension_numbers<[1], [0], [0], [1], [0, 0, 1, 1], [], []>, precision = #tpu.contract_precision<fp32>} : vector<32x16xf32>, vector<16x128xf32>, vector<32x128xf32> -> vector<32x128xf32>
    %c0_4 = arith.constant 0 : index
    %c0_5 = arith.constant 0 : index
    %c0_6 = arith.constant 0 : index
    %5 = vector.load %arg3[%c0_4, %c0_5, %c0_6] : memref<8x32x1xf32, #tpu.memory_space<vmem>>, vector<1x32x1xf32>
    %6 = vector.shape_cast %5 : vector<1x32x1xf32> to vector<32x1xf32>
    %7 = vector.broadcast %6 : vector<32x1xf32> to vector<32x128xf32>
    %8 = arith.addf %4, %7 : vector<32x128xf32>
    %9 = math.tanh %8 : vector<32x128xf32>
    %c1 = arith.constant 1 : index
    %c0_7 = arith.constant 0 : index
    %c0_8 = arith.constant 0 : index
    %10 = vector.load %arg2[%c1, %c0_7, %c0_8] : memref<8x32x32xf32, #tpu.memory_space<vmem>>, vector<1x32x32xf32>
    %11 = vector.shape_cast %10 : vector<1x32x32xf32> to vector<32x32xf32>
    %cst_9 = arith.constant dense<0.000000e+00> : vector<32x128xf32>
    %12 = tpu.matmul %11, %9, %cst_9 {dimension_numbers = #tpu.dot_dimension_numbers<[1], [0], [0], [1], [0, 0, 1, 1], [], []>, precision = #tpu.contract_precision<fp32>} : vector<32x32xf32>, vector<32x128xf32>, vector<32x128xf32> -> vector<32x128xf32>
    %c1_10 = arith.constant 1 : index
    %c0_11 = arith.constant 0 : index
    %c0_12 = arith.constant 0 : index
    %13 = vector.load %arg3[%c1_10, %c0_11, %c0_12] : memref<8x32x1xf32, #tpu.memory_space<vmem>>, vector<1x32x1xf32>
    %14 = vector.shape_cast %13 : vector<1x32x1xf32> to vector<32x1xf32>
    %15 = vector.broadcast %14 : vector<32x1xf32> to vector<32x128xf32>
    %16 = arith.addf %12, %15 : vector<32x128xf32>
    %17 = math.tanh %16 : vector<32x128xf32>
    %18 = arith.addf %9, %17 : vector<32x128xf32>
    %c2 = arith.constant 2 : index
    %c0_13 = arith.constant 0 : index
    %c0_14 = arith.constant 0 : index
    %19 = vector.load %arg2[%c2, %c0_13, %c0_14] : memref<8x32x32xf32, #tpu.memory_space<vmem>>, vector<1x32x32xf32>
    %20 = vector.shape_cast %19 : vector<1x32x32xf32> to vector<32x32xf32>
    %cst_15 = arith.constant dense<0.000000e+00> : vector<32x128xf32>
    %21 = tpu.matmul %20, %18, %cst_15 {dimension_numbers = #tpu.dot_dimension_numbers<[1], [0], [0], [1], [0, 0, 1, 1], [], []>, precision = #tpu.contract_precision<fp32>} : vector<32x32xf32>, vector<32x128xf32>, vector<32x128xf32> -> vector<32x128xf32>
    %c2_16 = arith.constant 2 : index
    %c0_17 = arith.constant 0 : index
    %c0_18 = arith.constant 0 : index
    %22 = vector.load %arg3[%c2_16, %c0_17, %c0_18] : memref<8x32x1xf32, #tpu.memory_space<vmem>>, vector<1x32x1xf32>
    %23 = vector.shape_cast %22 : vector<1x32x1xf32> to vector<32x1xf32>
    %24 = vector.broadcast %23 : vector<32x1xf32> to vector<32x128xf32>
    %25 = arith.addf %21, %24 : vector<32x128xf32>
    %26 = math.tanh %25 : vector<32x128xf32>
    %27 = arith.addf %18, %26 : vector<32x128xf32>
    %c3 = arith.constant 3 : index
    %c0_19 = arith.constant 0 : index
    %c0_20 = arith.constant 0 : index
    %28 = vector.load %arg2[%c3, %c0_19, %c0_20] : memref<8x32x32xf32, #tpu.memory_space<vmem>>, vector<1x32x32xf32>
    %29 = vector.shape_cast %28 : vector<1x32x32xf32> to vector<32x32xf32>
    %cst_21 = arith.constant dense<0.000000e+00> : vector<32x128xf32>
    %30 = tpu.matmul %29, %27, %cst_21 {dimension_numbers = #tpu.dot_dimension_numbers<[1], [0], [0], [1], [0, 0, 1, 1], [], []>, precision = #tpu.contract_precision<fp32>} : vector<32x32xf32>, vector<32x128xf32>, vector<32x128xf32> -> vector<32x128xf32>
    %c3_22 = arith.constant 3 : index
    %c0_23 = arith.constant 0 : index
    %c0_24 = arith.constant 0 : index
    %31 = vector.load %arg3[%c3_22, %c0_23, %c0_24] : memref<8x32x1xf32, #tpu.memory_space<vmem>>, vector<1x32x1xf32>
    %32 = vector.shape_cast %31 : vector<1x32x1xf32> to vector<32x1xf32>
    %33 = vector.broadcast %32 : vector<32x1xf32> to vector<32x128xf32>
    %34 = arith.addf %30, %33 : vector<32x128xf32>
    %c4 = arith.constant 4 : index
    %c0_25 = arith.constant 0 : index
    %c0_26 = arith.constant 0 : index
    %35 = vector.load %arg2[%c4, %c0_25, %c0_26] : memref<8x32x32xf32, #tpu.memory_space<vmem>>, vector<1x32x32xf32>
    %36 = vector.shape_cast %35 : vector<1x32x32xf32> to vector<32x32xf32>
    %cst_27 = arith.constant dense<0.000000e+00> : vector<32x128xf32>
    %37 = tpu.matmul %36, %34, %cst_27 {dimension_numbers = #tpu.dot_dimension_numbers<[1], [0], [0], [1], [0, 0, 1, 1], [], []>, precision = #tpu.contract_precision<fp32>} : vector<32x32xf32>, vector<32x128xf32>, vector<32x128xf32> -> vector<32x128xf32>
    %c4_28 = arith.constant 4 : index
    %c0_29 = arith.constant 0 : index
    %c0_30 = arith.constant 0 : index
    %38 = vector.load %arg3[%c4_28, %c0_29, %c0_30] : memref<8x32x1xf32, #tpu.memory_space<vmem>>, vector<1x32x1xf32>
    %39 = vector.shape_cast %38 : vector<1x32x1xf32> to vector<32x1xf32>
    %40 = vector.broadcast %39 : vector<32x1xf32> to vector<32x128xf32>
    %41 = arith.addf %37, %40 : vector<32x128xf32>
    %42 = math.tanh %41 : vector<32x128xf32>
    %c5 = arith.constant 5 : index
    %c0_31 = arith.constant 0 : index
    %c0_32 = arith.constant 0 : index
    %43 = vector.load %arg2[%c5, %c0_31, %c0_32] : memref<8x32x32xf32, #tpu.memory_space<vmem>>, vector<1x32x32xf32>
    %44 = vector.shape_cast %43 : vector<1x32x32xf32> to vector<32x32xf32>
    %cst_33 = arith.constant dense<0.000000e+00> : vector<32x128xf32>
    %45 = tpu.matmul %44, %42, %cst_33 {dimension_numbers = #tpu.dot_dimension_numbers<[1], [0], [0], [1], [0, 0, 1, 1], [], []>, precision = #tpu.contract_precision<fp32>} : vector<32x32xf32>, vector<32x128xf32>, vector<32x128xf32> -> vector<32x128xf32>
    %c5_34 = arith.constant 5 : index
    %c0_35 = arith.constant 0 : index
    %c0_36 = arith.constant 0 : index
    %46 = vector.load %arg3[%c5_34, %c0_35, %c0_36] : memref<8x32x1xf32, #tpu.memory_space<vmem>>, vector<1x32x1xf32>
    %47 = vector.shape_cast %46 : vector<1x32x1xf32> to vector<32x1xf32>
    %48 = vector.broadcast %47 : vector<32x1xf32> to vector<32x128xf32>
    %49 = arith.addf %45, %48 : vector<32x128xf32>
    %50 = math.tanh %49 : vector<32x128xf32>
    %51 = arith.addf %42, %50 : vector<32x128xf32>
    %c6 = arith.constant 6 : index
    %c0_37 = arith.constant 0 : index
    %c0_38 = arith.constant 0 : index
    %52 = vector.load %arg2[%c6, %c0_37, %c0_38] : memref<8x32x32xf32, #tpu.memory_space<vmem>>, vector<1x32x32xf32>
    %53 = vector.shape_cast %52 : vector<1x32x32xf32> to vector<32x32xf32>
    %cst_39 = arith.constant dense<0.000000e+00> : vector<32x128xf32>
    %54 = tpu.matmul %53, %51, %cst_39 {dimension_numbers = #tpu.dot_dimension_numbers<[1], [0], [0], [1], [0, 0, 1, 1], [], []>, precision = #tpu.contract_precision<fp32>} : vector<32x32xf32>, vector<32x128xf32>, vector<32x128xf32> -> vector<32x128xf32>
    %c6_40 = arith.constant 6 : index
    %c0_41 = arith.constant 0 : index
    %c0_42 = arith.constant 0 : index
    %55 = vector.load %arg3[%c6_40, %c0_41, %c0_42] : memref<8x32x1xf32, #tpu.memory_space<vmem>>, vector<1x32x1xf32>
    %56 = vector.shape_cast %55 : vector<1x32x1xf32> to vector<32x1xf32>
    %57 = vector.broadcast %56 : vector<32x1xf32> to vector<32x128xf32>
    %58 = arith.addf %54, %57 : vector<32x128xf32>
    %59 = math.tanh %58 : vector<32x128xf32>
    %60 = arith.addf %51, %59 : vector<32x128xf32>
    %c7 = arith.constant 7 : index
    %c0_43 = arith.constant 0 : index
    %c0_44 = arith.constant 0 : index
    %61 = vector.load %arg2[%c7, %c0_43, %c0_44] : memref<8x32x32xf32, #tpu.memory_space<vmem>>, vector<1x32x32xf32>
    %62 = vector.shape_cast %61 : vector<1x32x32xf32> to vector<32x32xf32>
    %63 = vector.extract_strided_slice %62 {offsets = [0, 0], sizes = [16, 32], strides = [1, 1]} : vector<32x32xf32> to vector<16x32xf32>
    %cst_45 = arith.constant dense<0.000000e+00> : vector<16x128xf32>
    %64 = tpu.matmul %63, %60, %cst_45 {dimension_numbers = #tpu.dot_dimension_numbers<[1], [0], [0], [1], [0, 0, 1, 1], [], []>, precision = #tpu.contract_precision<fp32>} : vector<16x32xf32>, vector<32x128xf32>, vector<16x128xf32> -> vector<16x128xf32>
    %c7_46 = arith.constant 7 : index
    %c0_47 = arith.constant 0 : index
    %c0_48 = arith.constant 0 : index
    %65 = vector.load %arg3[%c7_46, %c0_47, %c0_48] : memref<8x32x1xf32, #tpu.memory_space<vmem>>, vector<1x32x1xf32>
    %66 = vector.shape_cast %65 : vector<1x32x1xf32> to vector<32x1xf32>
    %67 = vector.extract_strided_slice %66 {offsets = [0, 0], sizes = [16, 1], strides = [1, 1]} : vector<32x1xf32> to vector<16x1xf32>
    %68 = vector.broadcast %67 : vector<16x1xf32> to vector<16x128xf32>
    %69 = arith.addf %64, %68 : vector<16x128xf32>
    %c0_49 = arith.constant 0 : index
    %c0_50 = arith.constant 0 : index
    %70 = vector.load %arg4[%c0_49, %c0_50] : memref<16x128xf32, #tpu.memory_space<vmem>>, vector<16x128xf32>
    tpu.vector_store %arg4[%c0_49, %c0_50], %69 {strides = array<i32>} : memref<16x128xf32, #tpu.memory_space<vmem>>, vector<16x128xf32>,
    return
  }
  func.func @transform_0(%arg0: i32) -> (i32, i32) {
    %c0_i32 = arith.constant 0 : i32
    %c0_i32_0 = arith.constant 0 : i32
    return %c0_i32, %arg0 : i32, i32
  }
  func.func @transform_1(%arg0: i32) -> (i32, i32, i32) {
    %c0_i32 = arith.constant 0 : i32
    %c0_i32_0 = arith.constant 0 : i32
    %c0_i32_1 = arith.constant 0 : i32
    %c0_i32_2 = arith.constant 0 : i32
    return %c0_i32, %c0_i32_0, %c0_i32_1 : i32, i32, i32
  }
  func.func @transform_2(%arg0: i32) -> (i32, i32, i32) {
    %c0_i32 = arith.constant 0 : i32
    %c0_i32_0 = arith.constant 0 : i32
    %c0_i32_1 = arith.constant 0 : i32
    %c0_i32_2 = arith.constant 0 : i32
    return %c0_i32, %c0_i32_0, %c0_i32_1 : i32, i32, i32
  }
  func.func @transform_3(%arg0: i32) -> (i32, i32) {
    %c0_i32 = arith.constant 0 : i32
    %c0_i32_0 = arith.constant 0 : i32
    return %c0_i32, %arg0 : i32, i32
  }
}

</mosaic_0001>

<llo_original>
// kernel: tpu_custom_call.1
$region0: #{tpu_custom_call.1}
  #allocation0 [shape = 'u32[]', space=smem, size = 0x4, offset = 0x4, fixed_abs, tag = 'smem constant byte address 0x4 - core index']
  #allocation1 [shape = 'u32[72,128]{1,0:T(1,128)}', space=vmem, size = 0x9000, scoped, tag = 'internal scratch']
  %s0 = inlined_call_operand.hbm [shape: f32[16,256], index: 0, kind: input, shape index: {}]
  %s1 = inlined_call_operand.vmem [shape: f32[8,32,32], index: 1, kind: input, shape index: {}]
  %s2 = inlined_call_operand.vmem [shape: f32[8,32,1], index: 2, kind: input, shape index: {}]
  %s3 = inlined_call_operand.hbm [shape: f32[16,256], index: 3, kind: output, shape index: {}]
  %s4 = sld [smem:[#allocation0]]
  $region49: #{tpu_custom_call.1} parent=0
    _
  %s6 = ssub.s32 1, %s4
  %s7 = scalar_select 0, %s6, %s4
  $region1: #{tpu_custom_call.1} parent=0
    #allocation2 [shape = 'u8[16384]{0}', space=vmem, size = 0x4000, scoped, tag = 'input window, operand 0']
    #allocation3 [shape = 's32[2]{0}', space=sflag, size = 0x8, scoped, tag = 'scoped memory for tpu_custom_call.1']
    #allocation4 [shape = 's32[2]{0}', space=sflag, size = 0x8, scoped, tag = 'scoped memory for tpu_custom_call.1']
    #allocation5 [shape = 'u8[16384]{0}', space=vmem, size = 0x4000, scoped, tag = 'output window, operand 0']
    %8 = vsyncpa [#allocation3], 0
    %s9 = scalar_lea.sflag [#allocation3], 1
    %10 = vsyncpa %s9, 0
    %11 = vsyncpa [#allocation4], 0
    %s12 = scalar_lea.sflag [#allocation4], 1
    %13 = vsyncpa %s12, 0
    loop: start=0, step=1, limit=4
    $region2: #{tpu_custom_call.1} parent=1 // loop_pre_header
      _
    $region3: #{tpu_custom_call.1} parent=1 // loop_header
      %s15 = sphi 0, %s19
      %p16 = scmp.ge.s32.totalorder %s15, 4
      %s25 = sphi 0, %s27
      %s28 = sphi 0, %s25
      %s29 = sphi 0, %s28
      %s45 = sphi 0, %s29
      %s49 = sphi 0, %s49
      %s51 = sphi 0, %s49
      %s52 = sphi 0, %s51
      %s66 = sphi 0, %s52
      %s70 = sphi 0, %s70
      %s72 = sphi 0, %s70
      %s73 = sphi 0, %s72
      %s87 = sphi 0, %s73
      %s93 = sphi 0, %s95
      %s96 = sphi 0, %s93
      %s97 = sphi 0, %s96
      %s113 = sphi 0, %s97
    $region4: #{tpu_custom_call.1} parent=1 // loop_header_branch
      %18 = sbr.rel (%p16) target = $region8
    $region5: #{tpu_custom_call.1} parent=1 // loop_body
      %s20 = ssub.s32 %s15, 1
      %s21 = ssub.s32 %s15, 2
      %s22 = sadd.s32 %s15, 1
      %s23 = ssub.s32 %s15, %s22
      %p24 = scmp.eq.s32.totalorder %s23, 0
      %s26 = sadd.s32 %s25, 1
      %s27 = scalar_select %p24, %s25, %s26
      %p30 = pneg %p24
      %p31 = scmp.eq.s32.totalorder %s15, 1
      %p32 = por %p30, %p31
      %p33 = scmp.ne.s32.totalorder %s25, %s28
      %p34 = scmp.eq.s32.totalorder %s15, 0
      %p35 = por %p33, %p34
      %p36 = scmp.ne.s32.totalorder %s25, %s28
      %p37 = scmp.eq.s32.totalorder %s20, 1
      %p38 = por %p36, %p37
      %p39 = scmp.ne.s32.totalorder %s28, %s29
      %p40 = scmp.eq.s32.totalorder %s20, 0
      %p41 = por %p39, %p40
      %p42 = scmp.ne.s32.totalorder %s28, %s29
      %p43 = scmp.eq.s32.totalorder %s21, 1
      %p44 = por %p42, %p43
      %p46 = scmp.ne.s32.totalorder %s29, %s45
      %p47 = scmp.eq.s32.totalorder %s21, 0
      %p48 = por %p46, %p47
      %s50 = sadd.s32 %s49, 1
      %p53 = scmp.eq.s32.totalorder %s15, 1
      %p54 = scmp.ne.s32.totalorder %s49, %s51
      %p55 = scmp.eq.s32.totalorder %s15, 0
      %p56 = por %p54, %p55
      %p57 = scmp.ne.s32.totalorder %s49, %s51
      %p58 = scmp.eq.s32.totalorder %s20, 1
      %p59 = por %p57, %p58
      %p60 = scmp.ne.s32.totalorder %s51, %s52
      %p61 = scmp.eq.s32.totalorder %s20, 0
      %p62 = por %p60, %p61
      %p63 = scmp.ne.s32.totalorder %s51, %s52
      %p64 = scmp.eq.s32.totalorder %s21, 1
      %p65 = por %p63, %p64
      %p67 = scmp.ne.s32.totalorder %s52, %s66
      %p68 = scmp.eq.s32.totalorder %s21, 0
      %p69 = por %p67, %p68
      %s71 = sadd.s32 %s70, 1
      %p74 = scmp.eq.s32.totalorder %s15, 1
      %p75 = scmp.ne.s32.totalorder %s70, %s72
      %p76 = scmp.eq.s32.totalorder %s15, 0
      %p77 = por %p75, %p76
      %p78 = scmp.ne.s32.totalorder %s70, %s72
      %p79 = scmp.eq.s32.totalorder %s20, 1
      %p80 = por %p78, %p79
      %p81 = scmp.ne.s32.totalorder %s72, %s73
      %p82 = scmp.eq.s32.totalorder %s20, 0
      %p83 = por %p81, %p82
      %p84 = scmp.ne.s32.totalorder %s72, %s73
      %p85 = scmp.eq.s32.totalorder %s21, 1
      %p86 = por %p84, %p85
      %p88 = scmp.ne.s32.totalorder %s73, %s87
      %p89 = scmp.eq.s32.totalorder %s21, 0
      %p90 = por %p88, %p89
      %s91 = ssub.s32 %s15, %s22
      %p92 = scmp.eq.s32.totalorder %s91, 0
      %s94 = sadd.s32 %s93, 1
      %s95 = scalar_select %p92, %s93, %s94
      %p98 = pneg %p92
      %p99 = scmp.eq.s32.totalorder %s15, 1
      %p100 = por %p98, %p99
      %p101 = scmp.ne.s32.totalorder %s93, %s96
      %p102 = scmp.eq.s32.totalorder %s15, 0
      %p103 = por %p101, %p102
      %p104 = scmp.ne.s32.totalorder %s93, %s96
      %p105 = scmp.eq.s32.totalorder %s20, 1
      %p106 = por %p104, %p105
      %p107 = scmp.ne.s32.totalorder %s96, %s97
      %p108 = scmp.eq.s32.totalorder %s20, 0
      %p109 = por %p107, %p108
      %p110 = scmp.ne.s32.totalorder %s96, %s97
      %p111 = scmp.eq.s32.totalorder %s21, 1
      %p112 = por %p110, %p111
      %p114 = scmp.ne.s32.totalorder %s97, %s113
      %p115 = scmp.eq.s32.totalorder %s21, 0
      %p116 = por %p114, %p115
      %p117 = scmp.le.s32.totalorder 1, %s15
      %p118 = scmp.lt.s32.totalorder %s15, 3
      %p119 = pnand %p117, %p118
      %p120 = pneg %p119
      // Predicated region
      $region9: #{tpu_custom_call.1} parent=5 // pred_check
        _
      $region10: #{tpu_custom_call.1} parent=5 // pred_check_branch
        %122 = sbr.rel (%p119) target = $region12
      $region11: #{tpu_custom_call.1} parent=5 // pred_region
        %s123 = ssub.s32 %s15, 1
        // Predicated region
        $region13: #{tpu_custom_call.1} parent=11 // pred_check
          %p124 = pneg %p62
        $region14: #{tpu_custom_call.1} parent=11 // pred_check_branch
          %126 = sbr.rel (%p124) target = $region16
        $region15: #{tpu_custom_call.1} parent=11 // pred_region
          _
        $region16: #{tpu_custom_call.1} parent=11 // pred_fallthru
          _
        // Predicated region
        $region17: #{tpu_custom_call.1} parent=11 // pred_check
          %p127 = pneg %p83
        $region18: #{tpu_custom_call.1} parent=11 // pred_check_branch
          %129 = sbr.rel (%p127) target = $region20
        $region19: #{tpu_custom_call.1} parent=11 // pred_region
          _
        $region20: #{tpu_custom_call.1} parent=11 // pred_fallthru
          _
      $region12: #{tpu_custom_call.1} parent=5 // pred_fallthru
        _
      %p130 = scmp.lt.s32.totalorder %s15, 2
      // Predicated region
      $region21: #{tpu_custom_call.1} parent=5 // pred_check
        %p131 = pneg %p130
      $region22: #{tpu_custom_call.1} parent=5 // pred_check_branch
        %133 = sbr.rel (%p131) target = $region24
      $region23: #{tpu_custom_call.1} parent=5 // pred_region
        // Predicated region
        $region25: #{tpu_custom_call.1} parent=23 // pred_check
          %p134 = pneg %p35
        $region26: #{tpu_custom_call.1} parent=23 // pred_check_branch
          %136 = sbr.rel (%p134) target = $region28
        $region27: #{tpu_custom_call.1} parent=23 // pred_region
          %s137 = sand.u32 %s25, 1
          %s138 = scalar_lea.sflag [#allocation3], %s137
          %s139 = sand.u32 %s25, 1
          %s140 = smul.addr %s139, 16
          %s141 = scalar_lea.vmem [#allocation2], %s140
          %143 = vsyncadd %s138, 0
          %s144 = smul.addr %s15, 8
          %s145 = scalar_lea.hbm %s0, %s144
          %s146 = sshll.u32 %s145, 4
          %s147 = int_to_ptr.hbm [resolvable:$true] %s146
          %s148 = sshll.u32 %s141, 4
          %s149 = int_to_ptr.vmem [resolvable:$true] %s148
          %154 = dma.hbm_to_vmem [thread:$0]  %s147, 256, %s149, %s138, 256, 128, 8
        $region28: #{tpu_custom_call.1} parent=23 // pred_fallthru
          _
      $region24: #{tpu_custom_call.1} parent=5 // pred_fallthru
        _
      %p155 = scmp.le.s32.totalorder 1, %s15
      %p156 = scmp.lt.s32.totalorder %s15, 3
      %p157 = pnand %p155, %p156
      %p158 = pneg %p157
      // Predicated region
      $region29: #{tpu_custom_call.1} parent=5 // pred_check
        _
      $region30: #{tpu_custom_call.1} parent=5 // pred_check_branch
        %160 = sbr.rel (%p157) target = $region32
      $region31: #{tpu_custom_call.1} parent=5 // pred_region
        %s161 = ssub.s32 %s15, 1
        %s162 = sand.u32 %s28, 1
        %s163 = scalar_lea.sflag [#allocation3], %s162
        %s164 = sand.u32 %s28, 1
        %s165 = smul.addr %s164, 16
        %s166 = scalar_lea.vmem [#allocation2], %s165
        // Predicated region
        $region33: #{tpu_custom_call.1} parent=31 // pred_check
          %p167 = pneg %p41
        $region34: #{tpu_custom_call.1} parent=31 // pred_check_branch
          %169 = sbr.rel (%p167) target = $region36
        $region35: #{tpu_custom_call.1} parent=31 // pred_region
          %171 = dma.done %s163, 256
        $region36: #{tpu_custom_call.1} parent=31 // pred_fallthru
          _
        %s172 = sand.u32 %s28, 1
        %s173 = scalar_lea.sflag [#allocation3], %s172
        %s174 = sand.u32 %s28, 1
        %s175 = smul.addr %s174, 16
        %s176 = scalar_lea.vmem [#allocation2], %s175
        %p177 = pneg %p41
        %p178 = pneg %p38
        %p179 = pneg %p62
        %p180 = pneg %p59
        %p181 = pneg %p83
        %p182 = pneg %p80
        %p183 = pneg %p109
        %p184 = pneg %p106
        %s185 = sand.u32 %s96, 1
        %s186 = scalar_lea.sflag [#allocation4], %s185
        %s187 = sand.u32 %s96, 1
        %s188 = smul.addr %s187, 16
        %s189 = scalar_lea.vmem [#allocation5], %s188
        %v190 = vld [vmem:[%s166] sm:$0xff]
        %v191 = vld [vmem:[%s166 + $0x8] sm:$0xff]
        %v192 = vld [vmem:[%s1] sm:$0xff]
        %v193 = vld [vmem:[%s1 + $0x8] sm:$0xff]
        %v194 = vld [vmem:[%s1 + $0x10] sm:$0xff]
        %v195 = vld [vmem:[%s1 + $0x18] sm:$0xff]
        %v196 = vld [vmem:[%s2] sm:$0xff]
        %v197 = vld [vmem:[%s2 + $0x8] sm:$0xff]
        %v198 = vld [vmem:[%s2 + $0x10] sm:$0xff]
        %v199 = vld [vmem:[%s2 + $0x18] sm:$0xff]
        %201 = vset.pattern.permute.xlu0 0
        %202 = vperm.xlu0 %201, %v196
        %v203 = vpop.permute.xlu0 %202
        %206 = vset.pattern.permute.xlu0 0
        %207 = vperm.xlu0 %206, %v197
        %v208 = vpop.permute.xlu0 %207
        %211 = vset.pattern.permute.xlu0 0
        %212 = vperm.xlu0 %211, %v198
        %v213 = vpop.permute.xlu0 %212
        %216 = vset.pattern.permute.xlu0 0
        %217 = vperm.xlu0 %216, %v199
        %v218 = vpop.permute.xlu0 %217
        %vm220 = vcmask 130048
        %v222 = vsel %vm220, %v192, 0
        %v225 = vsel %vm220, %v193, 0
        %v228 = vsel %vm220, %v194, 0
        %v231 = vsel %vm220, %v195, 0
        %233 = vmatpush.msra.mxu0 0.0
        %234 = vmatpush.msra.mxu0 0.0
        %235 = vmatpush.msra.mxu0 0.0
        %236 = vmatpush.msra.mxu0 0.0
        %237 = vmatpush.msra.mxu0 0.0
        %238 = vmatpush.msra.mxu0 0.0
        %239 = vmatpush.msra.mxu0 0.0
        %240 = vmatpush.msra.mxu0 0.0
        %241 = vmatpush.msra.mxu0 0.0
        %242 = vmatpush.msra.mxu0 0.0
        %243 = vmatpush.msra.mxu0 0.0
        %244 = vmatpush.msra.mxu0 0.0
        %245 = vmatpush.msra.mxu0 0.0
        %246 = vmatpush.msra.mxu0 0.0
        %v247 = vand.u32 %v191, 4294901760
        %248 = vmatpush.msra.mxu0 %v247
        %v249 = vand.u32 %v190, 4294901760
        %250 = vmatpush.msra.mxu0 %v249
        %v251 = vand.u32 %v222, 4294901760
        %v252 = vsub.f32 %v222, %v251
        %v253 = vand.u32 %v252, 4294901760
        %v254 = vsub.f32 %v252, %v253
        %v255 = vand.u32 %v254, 4294901760
        %256 = vmatmul.f32.gmra.mxu0 %v255
        %v257 = vpop.f32.mrf.mxu0
        %v258 = vadd.f32 %v203, %v257
        %v259 = vand.u32 %v225, 4294901760
        %v260 = vsub.f32 %v225, %v259
        %v261 = vand.u32 %v260, 4294901760
        %v262 = vsub.f32 %v260, %v261
        %v263 = vand.u32 %v262, 4294901760
        %264 = vmatmul.f32.gmra.mxu0 %v263
        %v265 = vpop.f32.mrf.mxu0
        %v266 = vadd.f32 %v208, %v265
        %v267 = vand.u32 %v228, 4294901760
        %v268 = vsub.f32 %v228, %v267
        %v269 = vand.u32 %v268, 4294901760
        %v270 = vsub.f32 %v268, %v269
        %v271 = vand.u32 %v270, 4294901760
        %272 = vmatmul.f32.gmra.mxu0 %v271
        %v273 = vpop.f32.mrf.mxu0
        %v274 = vadd.f32 %v213, %v273
        %v275 = vand.u32 %v231, 4294901760
        %v276 = vsub.f32 %v231, %v275
        %v277 = vand.u32 %v276, 4294901760
        %v278 = vsub.f32 %v276, %v277
        %v279 = vand.u32 %v278, 4294901760
        %280 = vmatmul.f32.gmra.mxu0 %v279
        %v281 = vpop.f32.mrf.mxu0
        %v282 = vadd.f32 %v218, %v281
        %283 = vdwg.mxu0
        %284 = vmatpush.msra.mxu0 0.0
        %285 = vmatpush.msra.mxu0 0.0
        %286 = vmatpush.msra.mxu0 0.0
        %287 = vmatpush.msra.mxu0 0.0
        %288 = vmatpush.msra.mxu0 0.0
        %289 = vmatpush.msra.mxu0 0.0
        %290 = vmatpush.msra.mxu0 0.0
        %291 = vmatpush.msra.mxu0 0.0
        %292 = vmatpush.msra.mxu0 0.0
        %293 = vmatpush.msra.mxu0 0.0
        %294 = vmatpush.msra.mxu0 0.0
        %295 = vmatpush.msra.mxu0 0.0
        %296 = vmatpush.msra.mxu0 0.0
        %297 = vmatpush.msra.mxu0 0.0
        %v298 = vand.u32 %v191, 4294901760
        %v299 = vsub.f32 %v191, %v298
        %v300 = vand.u32 %v299, 4294901760
        %v301 = vsub.f32 %v299, %v300
        %v302 = vand.u32 %v301, 4294901760
        %303 = vmatpush.msra.mxu0 %v302
        %v304 = vand.u32 %v190, 4294901760
        %v305 = vsub.f32 %v190, %v304
        %v306 = vand.u32 %v305, 4294901760
        %v307 = vsub.f32 %v305, %v306
        %v308 = vand.u32 %v307, 4294901760
        %309 = vmatpush.msra.mxu0 %v308
        %v310 = vand.u32 %v222, 4294901760
        %311 = vmatmul.f32.gmra.mxu0 %v310
        %v312 = vpop.f32.mrf.mxu0
        %v313 = vadd.f32 %v258, %v312
        %v314 = vand.u32 %v225, 4294901760
        %315 = vmatmul.f32.gmra.mxu0 %v314
        %v316 = vpop.f32.mrf.mxu0
        %v317 = vadd.f32 %v266, %v316
        %v318 = vand.u32 %v228, 4294901760
        %319 = vmatmul.f32.gmra.mxu0 %v318
        %v320 = vpop.f32.mrf.mxu0
        %v321 = vadd.f32 %v274, %v320
        %v322 = vand.u32 %v231, 4294901760
        %323 = vmatmul.f32.gmra.mxu0 %v322
        %v324 = vpop.f32.mrf.mxu0
        %v325 = vadd.f32 %v282, %v324
        %326 = vdwg.mxu0
        %327 = vmatpush.msra.mxu0 0.0
        %328 = vmatpush.msra.mxu0 0.0
        %329 = vmatpush.msra.mxu0 0.0
        %330 = vmatpush.msra.mxu0 0.0
        %331 = vmatpush.msra.mxu0 0.0
        %332 = vmatpush.msra.mxu0 0.0
        %333 = vmatpush.msra.mxu0 0.0
        %334 = vmatpush.msra.mxu0 0.0
        %335 = vmatpush.msra.mxu0 0.0
        %336 = vmatpush.msra.mxu0 0.0
        %337 = vmatpush.msra.mxu0 0.0
        %338 = vmatpush.msra.mxu0 0.0
        %339 = vmatpush.msra.mxu0 0.0
        %340 = vmatpush.msra.mxu0 0.0
        %v341 = vand.u32 %v191, 4294901760
        %v342 = vsub.f32 %v191, %v341
        %343 = vmatpush.msra.mxu0 %v342
        %v344 = vand.u32 %v190, 4294901760
        %v345 = vsub.f32 %v190, %v344
        %346 = vmatpush.msra.mxu0 %v345
        %v347 = vand.u32 %v222, 4294901760
        %v348 = vsub.f32 %v222, %v347
        %349 = vmatmul.f32.gmra.mxu0 %v348
        %v350 = vpop.f32.mrf.mxu0
        %v351 = vadd.f32 %v313, %v350
        %v352 = vand.u32 %v225, 4294901760
        %v353 = vsub.f32 %v225, %v352
        %354 = vmatmul.f32.gmra.mxu0 %v353
        %v355 = vpop.f32.mrf.mxu0
        %v356 = vadd.f32 %v317, %v355
        %v357 = vand.u32 %v228, 4294901760
        %v358 = vsub.f32 %v228, %v357
        %359 = vmatmul.f32.gmra.mxu0 %v358
        %v360 = vpop.f32.mrf.mxu0
        %v361 = vadd.f32 %v321, %v360
        %v362 = vand.u32 %v231, 4294901760
        %v363 = vsub.f32 %v231, %v362
        %364 = vmatmul.f32.gmra.mxu0 %v363
        %v365 = vpop.f32.mrf.mxu0
        %v366 = vadd.f32 %v325, %v365
        %367 = vdwg.mxu0
        %368 = vmatpush.msra.mxu0 0.0
        %369 = vmatpush.msra.mxu0 0.0
        %370 = vmatpush.msra.mxu0 0.0
        %371 = vmatpush.msra.mxu0 0.0
        %372 = vmatpush.msra.mxu0 0.0
        %373 = vmatpush.msra.mxu0 0.0
        %374 = vmatpush.msra.mxu0 0.0
        %375 = vmatpush.msra.mxu0 0.0
        %376 = vmatpush.msra.mxu0 0.0
        %377 = vmatpush.msra.mxu0 0.0
        %378 = vmatpush.msra.mxu0 0.0
        %379 = vmatpush.msra.mxu0 0.0
        %380 = vmatpush.msra.mxu0 0.0
        %381 = vmatpush.msra.mxu0 0.0
        %v382 = vand.u32 %v191, 4294901760
        %383 = vmatpush.msra.mxu0 %v382
        %v384 = vand.u32 %v190, 4294901760
        %385 = vmatpush.msra.mxu0 %v384
        %v386 = vand.u32 %v222, 4294901760
        %v387 = vsub.f32 %v222, %v386
        %v388 = vand.u32 %v387, 4294901760
        %389 = vmatmul.f32.gmra.mxu0 %v388
        %v390 = vpop.f32.mrf.mxu0
        %v391 = vadd.f32 %v351, %v390
        %v392 = vand.u32 %v225, 4294901760
        %v393 = vsub.f32 %v225, %v392
        %v394 = vand.u32 %v393, 4294901760
        %395 = vmatmul.f32.gmra.mxu0 %v394
        %v396 = vpop.f32.mrf.mxu0
        %v397 = vadd.f32 %v356, %v396
        %v398 = vand.u32 %v228, 4294901760
        %v399 = vsub.f32 %v228, %v398
        %v400 = vand.u32 %v399, 4294901760
        %401 = vmatmul.f32.gmra.mxu0 %v400
        %v402 = vpop.f32.mrf.mxu0
        %v403 = vadd.f32 %v361, %v402
        %v404 = vand.u32 %v231, 4294901760
        %v405 = vsub.f32 %v231, %v404
        %v406 = vand.u32 %v405, 4294901760
        %407 = vmatmul.f32.gmra.mxu0 %v406
        %v408 = vpop.f32.mrf.mxu0
        %v409 = vadd.f32 %v366, %v408
        %410 = vdwg.mxu0
        %411 = vmatpush.msra.mxu0 0.0
        %412 = vmatpush.msra.mxu0 0.0
        %413 = vmatpush.msra.mxu0 0.0
        %414 = vmatpush.msra.mxu0 0.0
        %415 = vmatpush.msra.mxu0 0.0
        %416 = vmatpush.msra.mxu0 0.0
        %417 = vmatpush.msra.mxu0 0.0
        %418 = vmatpush.msra.mxu0 0.0
        %419 = vmatpush.msra.mxu0 0.0
        %420 = vmatpush.msra.mxu0 0.0
        %421 = vmatpush.msra.mxu0 0.0
        %422 = vmatpush.msra.mxu0 0.0
        %423 = vmatpush.msra.mxu0 0.0
        %424 = vmatpush.msra.mxu0 0.0
        %v425 = vand.u32 %v191, 4294901760
        %v426 = vsub.f32 %v191, %v425
        %v427 = vand.u32 %v426, 4294901760
        %428 = vmatpush.msra.mxu0 %v427
        %v429 = vand.u32 %v190, 4294901760
        %v430 = vsub.f32 %v190, %v429
        %v431 = vand.u32 %v430, 4294901760
        %432 = vmatpush.msra.mxu0 %v431
        %v433 = vand.u32 %v222, 4294901760
        %434 = vmatmul.f32.gmra.mxu0 %v433
        %v435 = vpop.f32.mrf.mxu0
        %v436 = vadd.f32 %v391, %v435
        %v437 = vand.u32 %v225, 4294901760
        %438 = vmatmul.f32.gmra.mxu0 %v437
        %v439 = vpop.f32.mrf.mxu0
        %v440 = vadd.f32 %v397, %v439
        %v441 = vand.u32 %v228, 4294901760
        %442 = vmatmul.f32.gmra.mxu0 %v441
        %v443 = vpop.f32.mrf.mxu0
        %v444 = vadd.f32 %v403, %v443
        %v445 = vand.u32 %v231, 4294901760
        %446 = vmatmul.f32.gmra.mxu0 %v445
        %v447 = vpop.f32.mrf.mxu0
        %v448 = vadd.f32 %v409, %v447
        %449 = vdwg.mxu0
        %450 = vmatpush.msra.mxu0 0.0
        %451 = vmatpush.msra.mxu0 0.0
        %452 = vmatpush.msra.mxu0 0.0
        %453 = vmatpush.msra.mxu0 0.0
        %454 = vmatpush.msra.mxu0 0.0
        %455 = vmatpush.msra.mxu0 0.0
        %456 = vmatpush.msra.mxu0 0.0
        %457 = vmatpush.msra.mxu0 0.0
        %458 = vmatpush.msra.mxu0 0.0
        %459 = vmatpush.msra.mxu0 0.0
        %460 = vmatpush.msra.mxu0 0.0
        %461 = vmatpush.msra.mxu0 0.0
        %462 = vmatpush.msra.mxu0 0.0
        %463 = vmatpush.msra.mxu0 0.0
        %v464 = vand.u32 %v191, 4294901760
        %465 = vmatpush.msra.mxu0 %v464
        %v466 = vand.u32 %v190, 4294901760
        %467 = vmatpush.msra.mxu0 %v466
        %v468 = vand.u32 %v222, 4294901760
        %469 = vmatmul.f32.gmra.mxu0 %v468
        %v470 = vpop.f32.mrf.mxu0
        %v471 = vadd.f32 %v436, %v470
        %v472 = vand.u32 %v225, 4294901760
        %473 = vmatmul.f32.gmra.mxu0 %v472
        %v474 = vpop.f32.mrf.mxu0
        %v475 = vadd.f32 %v440, %v474
        %v476 = vand.u32 %v228, 4294901760
        %477 = vmatmul.f32.gmra.mxu0 %v476
        %v478 = vpop.f32.mrf.mxu0
        %v479 = vadd.f32 %v444, %v478
        %v480 = vand.u32 %v231, 4294901760
        %481 = vmatmul.f32.gmra.mxu0 %v480
        %v482 = vpop.f32.mrf.mxu0
        %v483 = vadd.f32 %v448, %v482
        %484 = vdwg.mxu0
        %v485 = vtanh.pop %v471
        %v486 = vtanh.pop %v475
        %v487 = vtanh.pop %v479
        %v488 = vtanh.pop %v483
        %s489 = scalar_lea.vmem %s1, 32
        %v490 = vld [vmem:[%s489] sm:$0xff]
        %v491 = vld [vmem:[%s489 + $0x8] sm:$0xff]
        %v492 = vld [vmem:[%s489 + $0x10] sm:$0xff]
        %v493 = vld [vmem:[%s489 + $0x18] sm:$0xff]
        %s494 = scalar_lea.vmem %s2, 32
        %v495 = vld [vmem:[%s494] sm:$0xff]
        %v496 = vld [vmem:[%s494 + $0x8] sm:$0xff]
        %v497 = vld [vmem:[%s494 + $0x10] sm:$0xff]
        %v498 = vld [vmem:[%s494 + $0x18] sm:$0xff]
        %500 = vset.pattern.permute.xlu0 0
        %501 = vperm.xlu0 %500, %v495
        %v502 = vpop.permute.xlu0 %501
        %505 = vset.pattern.permute.xlu0 0
        %506 = vperm.xlu0 %505, %v496
        %v507 = vpop.permute.xlu0 %506
        %510 = vset.pattern.permute.xlu0 0
        %511 = vperm.xlu0 %510, %v497
        %v512 = vpop.permute.xlu0 %511
        %515 = vset.pattern.permute.xlu0 0
        %516 = vperm.xlu0 %515, %v498
        %v517 = vpop.permute.xlu0 %516
        %vm519 = vcmask 261120
        %v521 = vsel %vm519, %v490, 0
        %v524 = vsel %vm519, %v491, 0
        %v527 = vsel %vm519, %v492, 0
        %v530 = vsel %vm519, %v493, 0
        %532 = vmatpush.msra.mxu0 0.0
        %533 = vmatpush.msra.mxu0 0.0
        %534 = vmatpush.msra.mxu0 0.0
        %535 = vmatpush.msra.mxu0 0.0
        %536 = vmatpush.msra.mxu0 0.0
        %537 = vmatpush.msra.mxu0 0.0
        %538 = vmatpush.msra.mxu0 0.0
        %539 = vmatpush.msra.mxu0 0.0
        %540 = vmatpush.msra.mxu0 0.0
        %541 = vmatpush.msra.mxu0 0.0
        %542 = vmatpush.msra.mxu0 0.0
        %543 = vmatpush.msra.mxu0 0.0
        %v544 = vand.u32 %v488, 4294901760
        %545 = vmatpush.msra.mxu0 %v544
        %v546 = vand.u32 %v487, 4294901760
        %547 = vmatpush.msra.mxu0 %v546
        %v548 = vand.u32 %v486, 4294901760
        %549 = vmatpush.msra.mxu0 %v548
        %v550 = vand.u32 %v485, 4294901760
        %551 = vmatpush.msra.mxu0 %v550
        %v552 = vand.u32 %v521, 4294901760
        %v553 = vsub.f32 %v521, %v552
        %v554 = vand.u32 %v553, 4294901760
        %v555 = vsub.f32 %v553, %v554
        %v556 = vand.u32 %v555, 4294901760
        %557 = vmatmul.f32.gmra.mxu0 %v556
        %v558 = vpop.f32.mrf.mxu0
        %v559 = vadd.f32 %v502, %v558
        %v560 = vand.u32 %v524, 4294901760
        %v561 = vsub.f32 %v524, %v560
        %v562 = vand.u32 %v561, 4294901760
        %v563 = vsub.f32 %v561, %v562
        %v564 = vand.u32 %v563, 4294901760
        %565 = vmatmul.f32.gmra.mxu0 %v564
        %v566 = vpop.f32.mrf.mxu0
        %v567 = vadd.f32 %v507, %v566
        %v568 = vand.u32 %v527, 4294901760
        %v569 = vsub.f32 %v527, %v568
        %v570 = vand.u32 %v569, 4294901760
        %v571 = vsub.f32 %v569, %v570
        %v572 = vand.u32 %v571, 4294901760
        %573 = vmatmul.f32.gmra.mxu0 %v572
        %v574 = vpop.f32.mrf.mxu0
        %v575 = vadd.f32 %v512, %v574
        %v576 = vand.u32 %v530, 4294901760
        %v577 = vsub.f32 %v530, %v576
        %v578 = vand.u32 %v577, 4294901760
        %v579 = vsub.f32 %v577, %v578
        %v580 = vand.u32 %v579, 4294901760
        %581 = vmatmul.f32.gmra.mxu0 %v580
        %v582 = vpop.f32.mrf.mxu0
        %v583 = vadd.f32 %v517, %v582
        %584 = vdwg.mxu0
        %585 = vmatpush.msra.mxu0 0.0
        %586 = vmatpush.msra.mxu0 0.0
        %587 = vmatpush.msra.mxu0 0.0
        %588 = vmatpush.msra.mxu0 0.0
        %589 = vmatpush.msra.mxu0 0.0
        %590 = vmatpush.msra.mxu0 0.0
        %591 = vmatpush.msra.mxu0 0.0
        %592 = vmatpush.msra.mxu0 0.0
        %593 = vmatpush.msra.mxu0 0.0
        %594 = vmatpush.msra.mxu0 0.0
        %595 = vmatpush.msra.mxu0 0.0
        %596 = vmatpush.msra.mxu0 0.0
        %v597 = vand.u32 %v488, 4294901760
        %v598 = vsub.f32 %v488, %v597
        %v599 = vand.u32 %v598, 4294901760
        %v600 = vsub.f32 %v598, %v599
        %v601 = vand.u32 %v600, 4294901760
        %602 = vmatpush.msra.mxu0 %v601
        %v603 = vand.u32 %v487, 4294901760
        %v604 = vsub.f32 %v487, %v603
        %v605 = vand.u32 %v604, 4294901760
        %v606 = vsub.f32 %v604, %v605
        %v607 = vand.u32 %v606, 4294901760
        %608 = vmatpush.msra.mxu0 %v607
        %v609 = vand.u32 %v486, 4294901760
        %v610 = vsub.f32 %v486, %v609
        %v611 = vand.u32 %v610, 4294901760
        %v612 = vsub.f32 %v610, %v611
        %v613 = vand.u32 %v612, 4294901760
        %614 = vmatpush.msra.mxu0 %v613
        %v615 = vand.u32 %v485, 4294901760
        %v616 = vsub.f32 %v485, %v615
        %v617 = vand.u32 %v616, 4294901760
        %v618 = vsub.f32 %v616, %v617
        %v619 = vand.u32 %v618, 4294901760
        %620 = vmatpush.msra.mxu0 %v619
        %v621 = vand.u32 %v521, 4294901760
        %622 = vmatmul.f32.gmra.mxu0 %v621
        %v623 = vpop.f32.mrf.mxu0
        %v624 = vadd.f32 %v559, %v623
        %v625 = vand.u32 %v524, 4294901760
        %626 = vmatmul.f32.gmra.mxu0 %v625
        %v627 = vpop.f32.mrf.mxu0
        %v628 = vadd.f32 %v567, %v627
        %v629 = vand.u32 %v527, 4294901760
        %630 = vmatmul.f32.gmra.mxu0 %v629
        %v631 = vpop.f32.mrf.mxu0
        %v632 = vadd.f32 %v575, %v631
        %v633 = vand.u32 %v530, 4294901760
        %634 = vmatmul.f32.gmra.mxu0 %v633
        %v635 = vpop.f32.mrf.mxu0
        %v636 = vadd.f32 %v583, %v635
        %637 = vdwg.mxu0
        %638 = vmatpush.msra.mxu0 0.0
        %639 = vmatpush.msra.mxu0 0.0
        %640 = vmatpush.msra.mxu0 0.0
        %641 = vmatpush.msra.mxu0 0.0
        %642 = vmatpush.msra.mxu0 0.0
        %643 = vmatpush.msra.mxu0 0.0
        %644 = vmatpush.msra.mxu0 0.0
        %645 = vmatpush.msra.mxu0 0.0
        %646 = vmatpush.msra.mxu0 0.0
        %647 = vmatpush.msra.mxu0 0.0
        %648 = vmatpush.msra.mxu0 0.0
        %649 = vmatpush.msra.mxu0 0.0
        %v650 = vand.u32 %v488, 4294901760
        %v651 = vsub.f32 %v488, %v650
        %652 = vmatpush.msra.mxu0 %v651
        %v653 = vand.u32 %v487, 4294901760
        %v654 = vsub.f32 %v487, %v653
        %655 = vmatpush.msra.mxu0 %v654
        %v656 = vand.u32 %v486, 4294901760
        %v657 = vsub.f32 %v486, %v656
        %658 = vmatpush.msra.mxu0 %v657
        %v659 = vand.u32 %v485, 4294901760
        %v660 = vsub.f32 %v485, %v659
        %661 = vmatpush.msra.mxu0 %v660
        %v662 = vand.u32 %v521, 4294901760
        %v663 = vsub.f32 %v521, %v662
        %664 = vmatmul.f32.gmra.mxu0 %v663
        %v665 = vpop.f32.mrf.mxu0
        %v666 = vadd.f32 %v624, %v665
        %v667 = vand.u32 %v524, 4294901760
        %v668 = vsub.f32 %v524, %v667
        %669 = vmatmul.f32.gmra.mxu0 %v668
        %v670 = vpop.f32.mrf.mxu0
        %v671 = vadd.f32 %v628, %v670
        %v672 = vand.u32 %v527, 4294901760
        %v673 = vsub.f32 %v527, %v672
        %674 = vmatmul.f32.gmra.mxu0 %v673
        %v675 = vpop.f32.mrf.mxu0
        %v676 = vadd.f32 %v632, %v675
        %v677 = vand.u32 %v530, 4294901760
        %v678 = vsub.f32 %v530, %v677
        %679 = vmatmul.f32.gmra.mxu0 %v678
        %v680 = vpop.f32.mrf.mxu0
        %v681 = vadd.f32 %v636, %v680
        %682 = vdwg.mxu0
        %683 = vmatpush.msra.mxu0 0.0
        %684 = vmatpush.msra.mxu0 0.0
        %685 = vmatpush.msra.mxu0 0.0
        %686 = vmatpush.msra.mxu0 0.0
        %687 = vmatpush.msra.mxu0 0.0
        %688 = vmatpush.msra.mxu0 0.0
        %689 = vmatpush.msra.mxu0 0.0
        %690 = vmatpush.msra.mxu0 0.0
        %691 = vmatpush.msra.mxu0 0.0
        %692 = vmatpush.msra.mxu0 0.0
        %693 = vmatpush.msra.mxu0 0.0
        %694 = vmatpush.msra.mxu0 0.0
        %v695 = vand.u32 %v488, 4294901760
        %696 = vmatpush.msra.mxu0 %v695
        %v697 = vand.u32 %v487, 4294901760
        %698 = vmatpush.msra.mxu0 %v697
        %v699 = vand.u32 %v486, 4294901760
        %700 = vmatpush.msra.mxu0 %v699
        %v701 = vand.u32 %v485, 4294901760
        %702 = vmatpush.msra.mxu0 %v701
        %v703 = vand.u32 %v521, 4294901760
        %v704 = vsub.f32 %v521, %v703
        %v705 = vand.u32 %v704, 4294901760
        %706 = vmatmul.f32.gmra.mxu0 %v705
        %v707 = vpop.f32.mrf.mxu0
        %v708 = vadd.f32 %v666, %v707
        %v709 = vand.u32 %v524, 4294901760
        %v710 = vsub.f32 %v524, %v709
        %v711 = vand.u32 %v710, 4294901760
        %712 = vmatmul.f32.gmra.mxu0 %v711
        %v713 = vpop.f32.mrf.mxu0
        %v714 = vadd.f32 %v671, %v713
        %v715 = vand.u32 %v527, 4294901760
        %v716 = vsub.f32 %v527, %v715
        %v717 = vand.u32 %v716, 4294901760
        %718 = vmatmul.f32.gmra.mxu0 %v717
        %v719 = vpop.f32.mrf.mxu0
        %v720 = vadd.f32 %v676, %v719
        %v721 = vand.u32 %v530, 4294901760
        %v722 = vsub.f32 %v530, %v721
        %v723 = vand.u32 %v722, 4294901760
        %724 = vmatmul.f32.gmra.mxu0 %v723
        %v725 = vpop.f32.mrf.mxu0
        %v726 = vadd.f32 %v681, %v725
        %727 = vdwg.mxu0
        %728 = vmatpush.msra.mxu0 0.0
        %729 = vmatpush.msra.mxu0 0.0
        %730 = vmatpush.msra.mxu0 0.0
        %731 = vmatpush.msra.mxu0 0.0
        %732 = vmatpush.msra.mxu0 0.0
        %733 = vmatpush.msra.mxu0 0.0
        %734 = vmatpush.msra.mxu0 0.0
        %735 = vmatpush.msra.mxu0 0.0
        %736 = vmatpush.msra.mxu0 0.0
        %737 = vmatpush.msra.mxu0 0.0
        %738 = vmatpush.msra.mxu0 0.0
        %739 = vmatpush.msra.mxu0 0.0
        %v740 = vand.u32 %v488, 4294901760
        %v741 = vsub.f32 %v488, %v740
        %v742 = vand.u32 %v741, 4294901760
        %743 = vmatpush.msra.mxu0 %v742
        %v744 = vand.u32 %v487, 4294901760
        %v745 = vsub.f32 %v487, %v744
        %v746 = vand.u32 %v745, 4294901760
        %747 = vmatpush.msra.mxu0 %v746
        %v748 = vand.u32 %v486, 4294901760
        %v749 = vsub.f32 %v486, %v748
        %v750 = vand.u32 %v749, 4294901760
        %751 = vmatpush.msra.mxu0 %v750
        %v752 = vand.u32 %v485, 4294901760
        %v753 = vsub.f32 %v485, %v752
        %v754 = vand.u32 %v753, 4294901760
        %755 = vmatpush.msra.mxu0 %v754
        %v756 = vand.u32 %v521, 4294901760
        %757 = vmatmul.f32.gmra.mxu0 %v756
        %v758 = vpop.f32.mrf.mxu0
        %v759 = vadd.f32 %v708, %v758
        %v760 = vand.u32 %v524, 4294901760
        %761 = vmatmul.f32.gmra.mxu0 %v760
        %v762 = vpop.f32.mrf.mxu0
        %v763 = vadd.f32 %v714, %v762
        %v764 = vand.u32 %v527, 4294901760
        %765 = vmatmul.f32.gmra.mxu0 %v764
        %v766 = vpop.f32.mrf.mxu0
        %v767 = vadd.f32 %v720, %v766
        %v768 = vand.u32 %v530, 4294901760
        %769 = vmatmul.f32.gmra.mxu0 %v768
        %v770 = vpop.f32.mrf.mxu0
        %v771 = vadd.f32 %v726, %v770
        %772 = vdwg.mxu0
        %773 = vmatpush.msra.mxu0 0.0
        %774 = vmatpush.msra.mxu0 0.0
        %775 = vmatpush.msra.mxu0 0.0
        %776 = vmatpush.msra.mxu0 0.0
        %777 = vmatpush.msra.mxu0 0.0
        %778 = vmatpush.msra.mxu0 0.0
        %779 = vmatpush.msra.mxu0 0.0
        %780 = vmatpush.msra.mxu0 0.0
        %781 = vmatpush.msra.mxu0 0.0
        %782 = vmatpush.msra.mxu0 0.0
        %783 = vmatpush.msra.mxu0 0.0
        %784 = vmatpush.msra.mxu0 0.0
        %v785 = vand.u32 %v488, 4294901760
        %786 = vmatpush.msra.mxu0 %v785
        %v787 = vand.u32 %v487, 4294901760
        %788 = vmatpush.msra.mxu0 %v787
        %v789 = vand.u32 %v486, 4294901760
        %790 = vmatpush.msra.mxu0 %v789
        %v791 = vand.u32 %v485, 4294901760
        %792 = vmatpush.msra.mxu0 %v791
        %v793 = vand.u32 %v521, 4294901760
        %794 = vmatmul.f32.gmra.mxu0 %v793
        %v795 = vpop.f32.mrf.mxu0
        %v796 = vadd.f32 %v759, %v795
        %v797 = vand.u32 %v524, 4294901760
        %798 = vmatmul.f32.gmra.mxu0 %v797
        %v799 = vpop.f32.mrf.mxu0
        %v800 = vadd.f32 %v763, %v799
        %v801 = vand.u32 %v527, 4294901760
        %802 = vmatmul.f32.gmra.mxu0 %v801
        %v803 = vpop.f32.mrf.mxu0
        %v804 = vadd.f32 %v767, %v803
        %v805 = vand.u32 %v530, 4294901760
        %806 = vmatmul.f32.gmra.mxu0 %v805
        %v807 = vpop.f32.mrf.mxu0
        %v808 = vadd.f32 %v771, %v807
        %809 = vdwg.mxu0
        %v810 = vtanh.pop %v796
        %v811 = vtanh.pop %v800
        %v812 = vtanh.pop %v804
        %v813 = vtanh.pop %v808
        %v814 = vadd.f32 %v485, %v810
        %v815 = vadd.f32 %v486, %v811
        %v816 = vadd.f32 %v487, %v812
        %v817 = vadd.f32 %v488, %v813
        %s818 = scalar_lea.vmem %s1, 64
        %v819 = vld [vmem:[%s818] sm:$0xff]
        %v820 = vld [vmem:[%s818 + $0x8] sm:$0xff]
        %v821 = vld [vmem:[%s818 + $0x10] sm:$0xff]
        %v822 = vld [vmem:[%s818 + $0x18] sm:$0xff]
        %s823 = scalar_lea.vmem %s2, 64
        %v824 = vld [vmem:[%s823] sm:$0xff]
        %v825 = vld [vmem:[%s823 + $0x8] sm:$0xff]
        %v826 = vld [vmem:[%s823 + $0x10] sm:$0xff]
        %v827 = vld [vmem:[%s823 + $0x18] sm:$0xff]
        %829 = vset.pattern.permute.xlu0 0
        %830 = vperm.xlu0 %829, %v824
        %v831 = vpop.permute.xlu0 %830
        %834 = vset.pattern.permute.xlu0 0
        %835 = vperm.xlu0 %834, %v825
        %v836 = vpop.permute.xlu0 %835
        %839 = vset.pattern.permute.xlu0 0
        %840 = vperm.xlu0 %839, %v826
        %v841 = vpop.permute.xlu0 %840
        %844 = vset.pattern.permute.xlu0 0
        %845 = vperm.xlu0 %844, %v827
        %v846 = vpop.permute.xlu0 %845
        %v849 = vsel %vm519, %v819, 0
        %v852 = vsel %vm519, %v820, 0
        %v855 = vsel %vm519, %v821, 0
        %v858 = vsel %vm519, %v822, 0
        %860 = vmatpush.msra.mxu0 0.0
        %861 = vmatpush.msra.mxu0 0.0
        %862 = vmatpush.msra.mxu0 0.0
        %863 = vmatpush.msra.mxu0 0.0
        %864 = vmatpush.msra.mxu0 0.0
        %865 = vmatpush.msra.mxu0 0.0
        %866 = vmatpush.msra.mxu0 0.0
        %867 = vmatpush.msra.mxu0 0.0
        %868 = vmatpush.msra.mxu0 0.0
        %869 = vmatpush.msra.mxu0 0.0
        %870 = vmatpush.msra.mxu0 0.0
        %871 = vmatpush.msra.mxu0 0.0
        %v872 = vand.u32 %v817, 4294901760
        %873 = vmatpush.msra.mxu0 %v872
        %v874 = vand.u32 %v816, 4294901760
        %875 = vmatpush.msra.mxu0 %v874
        %v876 = vand.u32 %v815, 4294901760
        %877 = vmatpush.msra.mxu0 %v876
        %v878 = vand.u32 %v814, 4294901760
        %879 = vmatpush.msra.mxu0 %v878
        %v880 = vand.u32 %v849, 4294901760
        %v881 = vsub.f32 %v849, %v880
        %v882 = vand.u32 %v881, 4294901760
        %v883 = vsub.f32 %v881, %v882
        %v884 = vand.u32 %v883, 4294901760
        %885 = vmatmul.f32.gmra.mxu0 %v884
        %v886 = vpop.f32.mrf.mxu0
        %v887 = vadd.f32 %v831, %v886
        %v888 = vand.u32 %v852, 4294901760
        %v889 = vsub.f32 %v852, %v888
        %v890 = vand.u32 %v889, 4294901760
        %v891 = vsub.f32 %v889, %v890
        %v892 = vand.u32 %v891, 4294901760
        %893 = vmatmul.f32.gmra.mxu0 %v892
        %v894 = vpop.f32.mrf.mxu0
        %v895 = vadd.f32 %v836, %v894
        %v896 = vand.u32 %v855, 4294901760
        %v897 = vsub.f32 %v855, %v896
        %v898 = vand.u32 %v897, 4294901760
        %v899 = vsub.f32 %v897, %v898
        %v900 = vand.u32 %v899, 4294901760
        %901 = vmatmul.f32.gmra.mxu0 %v900
        %v902 = vpop.f32.mrf.mxu0
        %v903 = vadd.f32 %v841, %v902
        %v904 = vand.u32 %v858, 4294901760
        %v905 = vsub.f32 %v858, %v904
        %v906 = vand.u32 %v905, 4294901760
        %v907 = vsub.f32 %v905, %v906
        %v908 = vand.u32 %v907, 4294901760
        %909 = vmatmul.f32.gmra.mxu0 %v908
        %v910 = vpop.f32.mrf.mxu0
        %v911 = vadd.f32 %v846, %v910
        %912 = vdwg.mxu0
        %913 = vmatpush.msra.mxu0 0.0
        %914 = vmatpush.msra.mxu0 0.0
        %915 = vmatpush.msra.mxu0 0.0
        %916 = vmatpush.msra.mxu0 0.0
        %917 = vmatpush.msra.mxu0 0.0
        %918 = vmatpush.msra.mxu0 0.0
        %919 = vmatpush.msra.mxu0 0.0
        %920 = vmatpush.msra.mxu0 0.0
        %921 = vmatpush.msra.mxu0 0.0
        %922 = vmatpush.msra.mxu0 0.0
        %923 = vmatpush.msra.mxu0 0.0
        %924 = vmatpush.msra.mxu0 0.0
        %v925 = vand.u32 %v817, 4294901760
        %v926 = vsub.f32 %v817, %v925
        %v927 = vand.u32 %v926, 4294901760
        %v928 = vsub.f32 %v926, %v927
        %v929 = vand.u32 %v928, 4294901760
        %930 = vmatpush.msra.mxu0 %v929
        %v931 = vand.u32 %v816, 4294901760
        %v932 = vsub.f32 %v816, %v931
        %v933 = vand.u32 %v932, 4294901760
        %v934 = vsub.f32 %v932, %v933
        %v935 = vand.u32 %v934, 4294901760
        %936 = vmatpush.msra.mxu0 %v935
        %v937 = vand.u32 %v815, 4294901760
        %v938 = vsub.f32 %v815, %v937
        %v939 = vand.u32 %v938, 4294901760
        %v940 = vsub.f32 %v938, %v939
        %v941 = vand.u32 %v940, 4294901760
        %942 = vmatpush.msra.mxu0 %v941
        %v943 = vand.u32 %v814, 4294901760
        %v944 = vsub.f32 %v814, %v943
        %v945 = vand.u32 %v944, 4294901760
        %v946 = vsub.f32 %v944, %v945
        %v947 = vand.u32 %v946, 4294901760
        %948 = vmatpush.msra.mxu0 %v947
        %v949 = vand.u32 %v849, 4294901760
        %950 = vmatmul.f32.gmra.mxu0 %v949
        %v951 = vpop.f32.mrf.mxu0
        %v952 = vadd.f32 %v887, %v951
        %v953 = vand.u32 %v852, 4294901760
        %954 = vmatmul.f32.gmra.mxu0 %v953
        %v955 = vpop.f32.mrf.mxu0
        %v956 = vadd.f32 %v895, %v955
        %v957 = vand.u32 %v855, 4294901760
        %958 = vmatmul.f32.gmra.mxu0 %v957
        %v959 = vpop.f32.mrf.mxu0
        %v960 = vadd.f32 %v903, %v959
        %v961 = vand.u32 %v858, 4294901760
        %962 = vmatmul.f32.gmra.mxu0 %v961
        %v963 = vpop.f32.mrf.mxu0
        %v964 = vadd.f32 %v911, %v963
        %965 = vdwg.mxu0
        %966 = vmatpush.msra.mxu0 0.0
        %967 = vmatpush.msra.mxu0 0.0
        %968 = vmatpush.msra.mxu0 0.0
        %969 = vmatpush.msra.mxu0 0.0
        %970 = vmatpush.msra.mxu0 0.0
        %971 = vmatpush.msra.mxu0 0.0
        %972 = vmatpush.msra.mxu0 0.0
        %973 = vmatpush.msra.mxu0 0.0
        %974 = vmatpush.msra.mxu0 0.0
        %975 = vmatpush.msra.mxu0 0.0
        %976 = vmatpush.msra.mxu0 0.0
        %977 = vmatpush.msra.mxu0 0.0
        %v978 = vand.u32 %v817, 4294901760
        %v979 = vsub.f32 %v817, %v978
        %980 = vmatpush.msra.mxu0 %v979
        %v981 = vand.u32 %v816, 4294901760
        %v982 = vsub.f32 %v816, %v981
        %983 = vmatpush.msra.mxu0 %v982
        %v984 = vand.u32 %v815, 4294901760
        %v985 = vsub.f32 %v815, %v984
        %986 = vmatpush.msra.mxu0 %v985
        %v987 = vand.u32 %v814, 4294901760
        %v988 = vsub.f32 %v814, %v987
        %989 = vmatpush.msra.mxu0 %v988
        %v990 = vand.u32 %v849, 4294901760
        %v991 = vsub.f32 %v849, %v990
        %992 = vmatmul.f32.gmra.mxu0 %v991
        %v993 = vpop.f32.mrf.mxu0
        %v994 = vadd.f32 %v952, %v993
        %v995 = vand.u32 %v852, 4294901760
        %v996 = vsub.f32 %v852, %v995
        %997 = vmatmul.f32.gmra.mxu0 %v996
        %v998 = vpop.f32.mrf.mxu0
        %v999 = vadd.f32 %v956, %v998
        %v1000 = vand.u32 %v855, 4294901760
        %v1001 = vsub.f32 %v855, %v1000
        %1002 = vmatmul.f32.gmra.mxu0 %v1001
        %v1003 = vpop.f32.mrf.mxu0
        %v1004 = vadd.f32 %v960, %v1003
        %v1005 = vand.u32 %v858, 4294901760
        %v1006 = vsub.f32 %v858, %v1005
        %1007 = vmatmul.f32.gmra.mxu0 %v1006
        %v1008 = vpop.f32.mrf.mxu0
        %v1009 = vadd.f32 %v964, %v1008
        %1010 = vdwg.mxu0
        %1011 = vmatpush.msra.mxu0 0.0
        %1012 = vmatpush.msra.mxu0 0.0
        %1013 = vmatpush.msra.mxu0 0.0
        %1014 = vmatpush.msra.mxu0 0.0
        %1015 = vmatpush.msra.mxu0 0.0
        %1016 = vmatpush.msra.mxu0 0.0
        %1017 = vmatpush.msra.mxu0 0.0
        %1018 = vmatpush.msra.mxu0 0.0
        %1019 = vmatpush.msra.mxu0 0.0
        %1020 = vmatpush.msra.mxu0 0.0
        %1021 = vmatpush.msra.mxu0 0.0
        %1022 = vmatpush.msra.mxu0 0.0
        %v1023 = vand.u32 %v817, 4294901760
        %1024 = vmatpush.msra.mxu0 %v1023
        %v1025 = vand.u32 %v816, 4294901760
        %1026 = vmatpush.msra.mxu0 %v1025
        %v1027 = vand.u32 %v815, 4294901760
        %1028 = vmatpush.msra.mxu0 %v1027
        %v1029 = vand.u32 %v814, 4294901760
        %1030 = vmatpush.msra.mxu0 %v1029
        %v1031 = vand.u32 %v849, 4294901760
        %v1032 = vsub.f32 %v849, %v1031
        %v1033 = vand.u32 %v1032, 4294901760
        %1034 = vmatmul.f32.gmra.mxu0 %v1033
        %v1035 = vpop.f32.mrf.mxu0
        %v1036 = vadd.f32 %v994, %v1035
        %v1037 = vand.u32 %v852, 4294901760
        %v1038 = vsub.f32 %v852, %v1037
        %v1039 = vand.u32 %v1038, 4294901760
        %1040 = vmatmul.f32.gmra.mxu0 %v1039
        %v1041 = vpop.f32.mrf.mxu0
        %v1042 = vadd.f32 %v999, %v1041
        %v1043 = vand.u32 %v855, 4294901760
        %v1044 = vsub.f32 %v855, %v1043
        %v1045 = vand.u32 %v1044, 4294901760
        %1046 = vmatmul.f32.gmra.mxu0 %v1045
        %v1047 = vpop.f32.mrf.mxu0
        %v1048 = vadd.f32 %v1004, %v1047
        %v1049 = vand.u32 %v858, 4294901760
        %v1050 = vsub.f32 %v858, %v1049
        %v1051 = vand.u32 %v1050, 4294901760
        %1052 = vmatmul.f32.gmra.mxu0 %v1051
        %v1053 = vpop.f32.mrf.mxu0
        %v1054 = vadd.f32 %v1009, %v1053
        %1055 = vdwg.mxu0
        %1056 = vmatpush.msra.mxu0 0.0
        %1057 = vmatpush.msra.mxu0 0.0
        %1058 = vmatpush.msra.mxu0 0.0
        %1059 = vmatpush.msra.mxu0 0.0
        %1060 = vmatpush.msra.mxu0 0.0
        %1061 = vmatpush.msra.mxu0 0.0
        %1062 = vmatpush.msra.mxu0 0.0
        %1063 = vmatpush.msra.mxu0 0.0
        %1064 = vmatpush.msra.mxu0 0.0
        %1065 = vmatpush.msra.mxu0 0.0
        %1066 = vmatpush.msra.mxu0 0.0
        %1067 = vmatpush.msra.mxu0 0.0
        %v1068 = vand.u32 %v817, 4294901760
        %v1069 = vsub.f32 %v817, %v1068
        %v1070 = vand.u32 %v1069, 4294901760
        %1071 = vmatpush.msra.mxu0 %v1070
        %v1072 = vand.u32 %v816, 4294901760
        %v1073 = vsub.f32 %v816, %v1072
        %v1074 = vand.u32 %v1073, 4294901760
        %1075 = vmatpush.msra.mxu0 %v1074
        %v1076 = vand.u32 %v815, 4294901760
        %v1077 = vsub.f32 %v815, %v1076
        %v1078 = vand.u32 %v1077, 4294901760
        %1079 = vmatpush.msra.mxu0 %v1078
        %v1080 = vand.u32 %v814, 4294901760
        %v1081 = vsub.f32 %v814, %v1080
        %v1082 = vand.u32 %v1081, 4294901760
        %1083 = vmatpush.msra.mxu0 %v1082
        %v1084 = vand.u32 %v849, 4294901760
        %1085 = vmatmul.f32.gmra.mxu0 %v1084
        %v1086 = vpop.f32.mrf.mxu0
        %v1087 = vadd.f32 %v1036, %v1086
        %v1088 = vand.u32 %v852, 4294901760
        %1089 = vmatmul.f32.gmra.mxu0 %v1088
        %v1090 = vpop.f32.mrf.mxu0
        %v1091 = vadd.f32 %v1042, %v1090
        %v1092 = vand.u32 %v855, 4294901760
        %1093 = vmatmul.f32.gmra.mxu0 %v1092
        %v1094 = vpop.f32.mrf.mxu0
        %v1095 = vadd.f32 %v1048, %v1094
        %v1096 = vand.u32 %v858, 4294901760
        %1097 = vmatmul.f32.gmra.mxu0 %v1096
        %v1098 = vpop.f32.mrf.mxu0
        %v1099 = vadd.f32 %v1054, %v1098
        %1100 = vdwg.mxu0
        %1101 = vmatpush.msra.mxu0 0.0
        %1102 = vmatpush.msra.mxu0 0.0
        %1103 = vmatpush.msra.mxu0 0.0
        %1104 = vmatpush.msra.mxu0 0.0
        %1105 = vmatpush.msra.mxu0 0.0
        %1106 = vmatpush.msra.mxu0 0.0
        %1107 = vmatpush.msra.mxu0 0.0
        %1108 = vmatpush.msra.mxu0 0.0
        %1109 = vmatpush.msra.mxu0 0.0
        %1110 = vmatpush.msra.mxu0 0.0
        %1111 = vmatpush.msra.mxu0 0.0
        %1112 = vmatpush.msra.mxu0 0.0
        %v1113 = vand.u32 %v817, 4294901760
        %1114 = vmatpush.msra.mxu0 %v1113
        %v1115 = vand.u32 %v816, 4294901760
        %1116 = vmatpush.msra.mxu0 %v1115
        %v1117 = vand.u32 %v815, 4294901760
        %1118 = vmatpush.msra.mxu0 %v1117
        %v1119 = vand.u32 %v814, 4294901760
        %1120 = vmatpush.msra.mxu0 %v1119
        %v1121 = vand.u32 %v849, 4294901760
        %1122 = vmatmul.f32.gmra.mxu0 %v1121
        %v1123 = vpop.f32.mrf.mxu0
        %v1124 = vadd.f32 %v1087, %v1123
        %v1125 = vand.u32 %v852, 4294901760
        %1126 = vmatmul.f32.gmra.mxu0 %v1125
        %v1127 = vpop.f32.mrf.mxu0
        %v1128 = vadd.f32 %v1091, %v1127
        %v1129 = vand.u32 %v855, 4294901760
        %1130 = vmatmul.f32.gmra.mxu0 %v1129
        %v1131 = vpop.f32.mrf.mxu0
        %v1132 = vadd.f32 %v1095, %v1131
        %v1133 = vand.u32 %v858, 4294901760
        %1134 = vmatmul.f32.gmra.mxu0 %v1133
        %v1135 = vpop.f32.mrf.mxu0
        %v1136 = vadd.f32 %v1099, %v1135
        %1137 = vdwg.mxu0
        %v1138 = vtanh.pop %v1124
        %v1139 = vtanh.pop %v1128
        %v1140 = vtanh.pop %v1132
        %v1141 = vtanh.pop %v1136
        %v1142 = vadd.f32 %v814, %v1138
        %v1143 = vadd.f32 %v815, %v1139
        %v1144 = vadd.f32 %v816, %v1140
        %v1145 = vadd.f32 %v817, %v1141
        %s1146 = scalar_lea.vmem %s1, 96
        %v1147 = vld [vmem:[%s1146] sm:$0xff]
        %v1148 = vld [vmem:[%s1146 + $0x8] sm:$0xff]
        %v1149 = vld [vmem:[%s1146 + $0x10] sm:$0xff]
        %v1150 = vld [vmem:[%s1146 + $0x18] sm:$0xff]
        %s1151 = scalar_lea.vmem %s2, 96
        %v1152 = vld [vmem:[%s1151] sm:$0xff]
        %v1153 = vld [vmem:[%s1151 + $0x8] sm:$0xff]
        %v1154 = vld [vmem:[%s1151 + $0x10] sm:$0xff]
        %v1155 = vld [vmem:[%s1151 + $0x18] sm:$0xff]
        %1157 = vset.pattern.permute.xlu0 0
        %1158 = vperm.xlu0 %1157, %v1152
        %v1159 = vpop.permute.xlu0 %1158
        %1162 = vset.pattern.permute.xlu0 0
        %1163 = vperm.xlu0 %1162, %v1153
        %v1164 = vpop.permute.xlu0 %1163
        %1167 = vset.pattern.permute.xlu0 0
        %1168 = vperm.xlu0 %1167, %v1154
        %v1169 = vpop.permute.xlu0 %1168
        %1172 = vset.pattern.permute.xlu0 0
        %1173 = vperm.xlu0 %1172, %v1155
        %v1174 = vpop.permute.xlu0 %1173
        %v1177 = vsel %vm519, %v1147, 0
        %v1180 = vsel %vm519, %v1148, 0
        %v1183 = vsel %vm519, %v1149, 0
        %v1186 = vsel %vm519, %v1150, 0
        %1188 = vmatpush.msra.mxu0 0.0
        %1189 = vmatpush.msra.mxu0 0.0
        %1190 = vmatpush.msra.mxu0 0.0
        %1191 = vmatpush.msra.mxu0 0.0
        %1192 = vmatpush.msra.mxu0 0.0
        %1193 = vmatpush.msra.mxu0 0.0
        %1194 = vmatpush.msra.mxu0 0.0
        %1195 = vmatpush.msra.mxu0 0.0
        %1196 = vmatpush.msra.mxu0 0.0
        %1197 = vmatpush.msra.mxu0 0.0
        %1198 = vmatpush.msra.mxu0 0.0
        %1199 = vmatpush.msra.mxu0 0.0
        %v1200 = vand.u32 %v1145, 4294901760
        %1201 = vmatpush.msra.mxu0 %v1200
        %v1202 = vand.u32 %v1144, 4294901760
        %1203 = vmatpush.msra.mxu0 %v1202
        %v1204 = vand.u32 %v1143, 4294901760
        %1205 = vmatpush.msra.mxu0 %v1204
        %v1206 = vand.u32 %v1142, 4294901760
        %1207 = vmatpush.msra.mxu0 %v1206
        %v1208 = vand.u32 %v1177, 4294901760
        %v1209 = vsub.f32 %v1177, %v1208
        %v1210 = vand.u32 %v1209, 4294901760
        %v1211 = vsub.f32 %v1209, %v1210
        %v1212 = vand.u32 %v1211, 4294901760
        %1213 = vmatmul.f32.gmra.mxu0 %v1212
        %v1214 = vpop.f32.mrf.mxu0
        %v1215 = vadd.f32 %v1159, %v1214
        %v1216 = vand.u32 %v1180, 4294901760
        %v1217 = vsub.f32 %v1180, %v1216
        %v1218 = vand.u32 %v1217, 4294901760
        %v1219 = vsub.f32 %v1217, %v1218
        %v1220 = vand.u32 %v1219, 4294901760
        %1221 = vmatmul.f32.gmra.mxu0 %v1220
        %v1222 = vpop.f32.mrf.mxu0
        %v1223 = vadd.f32 %v1164, %v1222
        %v1224 = vand.u32 %v1183, 4294901760
        %v1225 = vsub.f32 %v1183, %v1224
        %v1226 = vand.u32 %v1225, 4294901760
        %v1227 = vsub.f32 %v1225, %v1226
        %v1228 = vand.u32 %v1227, 4294901760
        %1229 = vmatmul.f32.gmra.mxu0 %v1228
        %v1230 = vpop.f32.mrf.mxu0
        %v1231 = vadd.f32 %v1169, %v1230
        %v1232 = vand.u32 %v1186, 4294901760
        %v1233 = vsub.f32 %v1186, %v1232
        %v1234 = vand.u32 %v1233, 4294901760
        %v1235 = vsub.f32 %v1233, %v1234
        %v1236 = vand.u32 %v1235, 4294901760
        %1237 = vmatmul.f32.gmra.mxu0 %v1236
        %v1238 = vpop.f32.mrf.mxu0
        %v1239 = vadd.f32 %v1174, %v1238
        %1240 = vdwg.mxu0
        %1241 = vmatpush.msra.mxu0 0.0
        %1242 = vmatpush.msra.mxu0 0.0
        %1243 = vmatpush.msra.mxu0 0.0
        %1244 = vmatpush.msra.mxu0 0.0
        %1245 = vmatpush.msra.mxu0 0.0
        %1246 = vmatpush.msra.mxu0 0.0
        %1247 = vmatpush.msra.mxu0 0.0
        %1248 = vmatpush.msra.mxu0 0.0
        %1249 = vmatpush.msra.mxu0 0.0
        %1250 = vmatpush.msra.mxu0 0.0
        %1251 = vmatpush.msra.mxu0 0.0
        %1252 = vmatpush.msra.mxu0 0.0
        %v1253 = vand.u32 %v1145, 4294901760
        %v1254 = vsub.f32 %v1145, %v1253
        %v1255 = vand.u32 %v1254, 4294901760
        %v1256 = vsub.f32 %v1254, %v1255
        %v1257 = vand.u32 %v1256, 4294901760
        %1258 = vmatpush.msra.mxu0 %v1257
        %v1259 = vand.u32 %v1144, 4294901760
        %v1260 = vsub.f32 %v1144, %v1259
        %v1261 = vand.u32 %v1260, 4294901760
        %v1262 = vsub.f32 %v1260, %v1261
        %v1263 = vand.u32 %v1262, 4294901760
        %1264 = vmatpush.msra.mxu0 %v1263
        %v1265 = vand.u32 %v1143, 4294901760
        %v1266 = vsub.f32 %v1143, %v1265
        %v1267 = vand.u32 %v1266, 4294901760
        %v1268 = vsub.f32 %v1266, %v1267
        %v1269 = vand.u32 %v1268, 4294901760
        %1270 = vmatpush.msra.mxu0 %v1269
        %v1271 = vand.u32 %v1142, 4294901760
        %v1272 = vsub.f32 %v1142, %v1271
        %v1273 = vand.u32 %v1272, 4294901760
        %v1274 = vsub.f32 %v1272, %v1273
        %v1275 = vand.u32 %v1274, 4294901760
        %1276 = vmatpush.msra.mxu0 %v1275
        %v1277 = vand.u32 %v1177, 4294901760
        %1278 = vmatmul.f32.gmra.mxu0 %v1277
        %v1279 = vpop.f32.mrf.mxu0
        %v1280 = vadd.f32 %v1215, %v1279
        %v1281 = vand.u32 %v1180, 4294901760
        %1282 = vmatmul.f32.gmra.mxu0 %v1281
        %v1283 = vpop.f32.mrf.mxu0
        %v1284 = vadd.f32 %v1223, %v1283
        %v1285 = vand.u32 %v1183, 4294901760
        %1286 = vmatmul.f32.gmra.mxu0 %v1285
        %v1287 = vpop.f32.mrf.mxu0
        %v1288 = vadd.f32 %v1231, %v1287
        %v1289 = vand.u32 %v1186, 4294901760
        %1290 = vmatmul.f32.gmra.mxu0 %v1289
        %v1291 = vpop.f32.mrf.mxu0
        %v1292 = vadd.f32 %v1239, %v1291
        %1293 = vdwg.mxu0
        %1294 = vmatpush.msra.mxu0 0.0
        %1295 = vmatpush.msra.mxu0 0.0
        %1296 = vmatpush.msra.mxu0 0.0
        %1297 = vmatpush.msra.mxu0 0.0
        %1298 = vmatpush.msra.mxu0 0.0
        %1299 = vmatpush.msra.mxu0 0.0
        %1300 = vmatpush.msra.mxu0 0.0
        %1301 = vmatpush.msra.mxu0 0.0
        %1302 = vmatpush.msra.mxu0 0.0
        %1303 = vmatpush.msra.mxu0 0.0
        %1304 = vmatpush.msra.mxu0 0.0
        %1305 = vmatpush.msra.mxu0 0.0
        %v1306 = vand.u32 %v1145, 4294901760
        %v1307 = vsub.f32 %v1145, %v1306
        %1308 = vmatpush.msra.mxu0 %v1307
        %v1309 = vand.u32 %v1144, 4294901760
        %v1310 = vsub.f32 %v1144, %v1309
        %1311 = vmatpush.msra.mxu0 %v1310
        %v1312 = vand.u32 %v1143, 4294901760
        %v1313 = vsub.f32 %v1143, %v1312
        %1314 = vmatpush.msra.mxu0 %v1313
        %v1315 = vand.u32 %v1142, 4294901760
        %v1316 = vsub.f32 %v1142, %v1315
        %1317 = vmatpush.msra.mxu0 %v1316
        %v1318 = vand.u32 %v1177, 4294901760
        %v1319 = vsub.f32 %v1177, %v1318
        %1320 = vmatmul.f32.gmra.mxu0 %v1319
        %v1321 = vpop.f32.mrf.mxu0
        %v1322 = vadd.f32 %v1280, %v1321
        %v1323 = vand.u32 %v1180, 4294901760
        %v1324 = vsub.f32 %v1180, %v1323
        %1325 = vmatmul.f32.gmra.mxu0 %v1324
        %v1326 = vpop.f32.mrf.mxu0
        %v1327 = vadd.f32 %v1284, %v1326
        %v1328 = vand.u32 %v1183, 4294901760
        %v1329 = vsub.f32 %v1183, %v1328
        %1330 = vmatmul.f32.gmra.mxu0 %v1329
        %v1331 = vpop.f32.mrf.mxu0
        %v1332 = vadd.f32 %v1288, %v1331
        %v1333 = vand.u32 %v1186, 4294901760
        %v1334 = vsub.f32 %v1186, %v1333
        %1335 = vmatmul.f32.gmra.mxu0 %v1334
        %v1336 = vpop.f32.mrf.mxu0
        %v1337 = vadd.f32 %v1292, %v1336
        %1338 = vdwg.mxu0
        %1339 = vmatpush.msra.mxu0 0.0
        %1340 = vmatpush.msra.mxu0 0.0
        %1341 = vmatpush.msra.mxu0 0.0
        %1342 = vmatpush.msra.mxu0 0.0
        %1343 = vmatpush.msra.mxu0 0.0
        %1344 = vmatpush.msra.mxu0 0.0
        %1345 = vmatpush.msra.mxu0 0.0
        %1346 = vmatpush.msra.mxu0 0.0
        %1347 = vmatpush.msra.mxu0 0.0
        %1348 = vmatpush.msra.mxu0 0.0
        %1349 = vmatpush.msra.mxu0 0.0
        %1350 = vmatpush.msra.mxu0 0.0
        %v1351 = vand.u32 %v1145, 4294901760
        %1352 = vmatpush.msra.mxu0 %v1351
        %v1353 = vand.u32 %v1144, 4294901760
        %1354 = vmatpush.msra.mxu0 %v1353
        %v1355 = vand.u32 %v1143, 4294901760
        %1356 = vmatpush.msra.mxu0 %v1355
        %v1357 = vand.u32 %v1142, 4294901760
        %1358 = vmatpush.msra.mxu0 %v1357
        %v1359 = vand.u32 %v1177, 4294901760
        %v1360 = vsub.f32 %v1177, %v1359
        %v1361 = vand.u32 %v1360, 4294901760
        %1362 = vmatmul.f32.gmra.mxu0 %v1361
        %v1363 = vpop.f32.mrf.mxu0
        %v1364 = vadd.f32 %v1322, %v1363
        %v1365 = vand.u32 %v1180, 4294901760
        %v1366 = vsub.f32 %v1180, %v1365
        %v1367 = vand.u32 %v1366, 4294901760
        %1368 = vmatmul.f32.gmra.mxu0 %v1367
        %v1369 = vpop.f32.mrf.mxu0
        %v1370 = vadd.f32 %v1327, %v1369
        %v1371 = vand.u32 %v1183, 4294901760
        %v1372 = vsub.f32 %v1183, %v1371
        %v1373 = vand.u32 %v1372, 4294901760
        %1374 = vmatmul.f32.gmra.mxu0 %v1373
        %v1375 = vpop.f32.mrf.mxu0
        %v1376 = vadd.f32 %v1332, %v1375
        %v1377 = vand.u32 %v1186, 4294901760
        %v1378 = vsub.f32 %v1186, %v1377
        %v1379 = vand.u32 %v1378, 4294901760
        %1380 = vmatmul.f32.gmra.mxu0 %v1379
        %v1381 = vpop.f32.mrf.mxu0
        %v1382 = vadd.f32 %v1337, %v1381
        %1383 = vdwg.mxu0
        %1384 = vmatpush.msra.mxu0 0.0
        %1385 = vmatpush.msra.mxu0 0.0
        %1386 = vmatpush.msra.mxu0 0.0
        %1387 = vmatpush.msra.mxu0 0.0
        %1388 = vmatpush.msra.mxu0 0.0
        %1389 = vmatpush.msra.mxu0 0.0
        %1390 = vmatpush.msra.mxu0 0.0
        %1391 = vmatpush.msra.mxu0 0.0
        %1392 = vmatpush.msra.mxu0 0.0
        %1393 = vmatpush.msra.mxu0 0.0
        %1394 = vmatpush.msra.mxu0 0.0
        %1395 = vmatpush.msra.mxu0 0.0
        %v1396 = vand.u32 %v1145, 4294901760
        %v1397 = vsub.f32 %v1145, %v1396
        %v1398 = vand.u32 %v1397, 4294901760
        %1399 = vmatpush.msra.mxu0 %v1398
        %v1400 = vand.u32 %v1144, 4294901760
        %v1401 = vsub.f32 %v1144, %v1400
        %v1402 = vand.u32 %v1401, 4294901760
        %1403 = vmatpush.msra.mxu0 %v1402
        %v1404 = vand.u32 %v1143, 4294901760
        %v1405 = vsub.f32 %v1143, %v1404
        %v1406 = vand.u32 %v1405, 4294901760
        %1407 = vmatpush.msra.mxu0 %v1406
        %v1408 = vand.u32 %v1142, 4294901760
        %v1409 = vsub.f32 %v1142, %v1408
        %v1410 = vand.u32 %v1409, 4294901760
        %1411 = vmatpush.msra.mxu0 %v1410
        %v1412 = vand.u32 %v1177, 4294901760
        %1413 = vmatmul.f32.gmra.mxu0 %v1412
        %v1414 = vpop.f32.mrf.mxu0
        %v1415 = vadd.f32 %v1364, %v1414
        %v1416 = vand.u32 %v1180, 4294901760
        %1417 = vmatmul.f32.gmra.mxu0 %v1416
        %v1418 = vpop.f32.mrf.mxu0
        %v1419 = vadd.f32 %v1370, %v1418
        %v1420 = vand.u32 %v1183, 4294901760
        %1421 = vmatmul.f32.gmra.mxu0 %v1420
        %v1422 = vpop.f32.mrf.mxu0
        %v1423 = vadd.f32 %v1376, %v1422
        %v1424 = vand.u32 %v1186, 4294901760
        %1425 = vmatmul.f32.gmra.mxu0 %v1424
        %v1426 = vpop.f32.mrf.mxu0
        %v1427 = vadd.f32 %v1382, %v1426
        %1428 = vdwg.mxu0
        %1429 = vmatpush.msra.mxu0 0.0
        %1430 = vmatpush.msra.mxu0 0.0
        %1431 = vmatpush.msra.mxu0 0.0
        %1432 = vmatpush.msra.mxu0 0.0
        %1433 = vmatpush.msra.mxu0 0.0
        %1434 = vmatpush.msra.mxu0 0.0
        %1435 = vmatpush.msra.mxu0 0.0
        %1436 = vmatpush.msra.mxu0 0.0
        %1437 = vmatpush.msra.mxu0 0.0
        %1438 = vmatpush.msra.mxu0 0.0
        %1439 = vmatpush.msra.mxu0 0.0
        %1440 = vmatpush.msra.mxu0 0.0
        %v1441 = vand.u32 %v1145, 4294901760
        %1442 = vmatpush.msra.mxu0 %v1441
        %v1443 = vand.u32 %v1144, 4294901760
        %1444 = vmatpush.msra.mxu0 %v1443
        %v1445 = vand.u32 %v1143, 4294901760
        %1446 = vmatpush.msra.mxu0 %v1445
        %v1447 = vand.u32 %v1142, 4294901760
        %1448 = vmatpush.msra.mxu0 %v1447
        %v1449 = vand.u32 %v1177, 4294901760
        %1450 = vmatmul.f32.gmra.mxu0 %v1449
        %v1451 = vpop.f32.mrf.mxu0
        %v1452 = vadd.f32 %v1415, %v1451
        %v1453 = vand.u32 %v1180, 4294901760
        %1454 = vmatmul.f32.gmra.mxu0 %v1453
        %v1455 = vpop.f32.mrf.mxu0
        %v1456 = vadd.f32 %v1419, %v1455
        %v1457 = vand.u32 %v1183, 4294901760
        %1458 = vmatmul.f32.gmra.mxu0 %v1457
        %v1459 = vpop.f32.mrf.mxu0
        %v1460 = vadd.f32 %v1423, %v1459
        %v1461 = vand.u32 %v1186, 4294901760
        %1462 = vmatmul.f32.gmra.mxu0 %v1461
        %v1463 = vpop.f32.mrf.mxu0
        %v1464 = vadd.f32 %v1427, %v1463
        %1465 = vdwg.mxu0
        %s1466 = scalar_lea.vmem %s1, 128
        %v1467 = vld [vmem:[%s1466] sm:$0xff]
        %v1468 = vld [vmem:[%s1466 + $0x8] sm:$0xff]
        %v1469 = vld [vmem:[%s1466 + $0x10] sm:$0xff]
        %v1470 = vld [vmem:[%s1466 + $0x18] sm:$0xff]
        %s1471 = scalar_lea.vmem %s2, 128
        %v1472 = vld [vmem:[%s1471] sm:$0xff]
        %v1473 = vld [vmem:[%s1471 + $0x8] sm:$0xff]
        %v1474 = vld [vmem:[%s1471 + $0x10] sm:$0xff]
        %v1475 = vld [vmem:[%s1471 + $0x18] sm:$0xff]
        %1477 = vset.pattern.permute.xlu0 0
        %1478 = vperm.xlu0 %1477, %v1472
        %v1479 = vpop.permute.xlu0 %1478
        %1482 = vset.pattern.permute.xlu0 0
        %1483 = vperm.xlu0 %1482, %v1473
        %v1484 = vpop.permute.xlu0 %1483
        %1487 = vset.pattern.permute.xlu0 0
        %1488 = vperm.xlu0 %1487, %v1474
        %v1489 = vpop.permute.xlu0 %1488
        %1492 = vset.pattern.permute.xlu0 0
        %1493 = vperm.xlu0 %1492, %v1475
        %v1494 = vpop.permute.xlu0 %1493
        %v1497 = vsel %vm519, %v1467, 0
        %v1500 = vsel %vm519, %v1468, 0
        %v1503 = vsel %vm519, %v1469, 0
        %v1506 = vsel %vm519, %v1470, 0
        %1508 = vmatpush.msra.mxu0 0.0
        %1509 = vmatpush.msra.mxu0 0.0
        %1510 = vmatpush.msra.mxu0 0.0
        %1511 = vmatpush.msra.mxu0 0.0
        %1512 = vmatpush.msra.mxu0 0.0
        %1513 = vmatpush.msra.mxu0 0.0
        %1514 = vmatpush.msra.mxu0 0.0
        %1515 = vmatpush.msra.mxu0 0.0
        %1516 = vmatpush.msra.mxu0 0.0
        %1517 = vmatpush.msra.mxu0 0.0
        %1518 = vmatpush.msra.mxu0 0.0
        %1519 = vmatpush.msra.mxu0 0.0
        %v1520 = vand.u32 %v1464, 4294901760
        %1521 = vmatpush.msra.mxu0 %v1520
        %v1522 = vand.u32 %v1460, 4294901760
        %1523 = vmatpush.msra.mxu0 %v1522
        %v1524 = vand.u32 %v1456, 4294901760
        %1525 = vmatpush.msra.mxu0 %v1524
        %v1526 = vand.u32 %v1452, 4294901760
        %1527 = vmatpush.msra.mxu0 %v1526
        %v1528 = vand.u32 %v1497, 4294901760
        %v1529 = vsub.f32 %v1497, %v1528
        %v1530 = vand.u32 %v1529, 4294901760
        %v1531 = vsub.f32 %v1529, %v1530
        %v1532 = vand.u32 %v1531, 4294901760
        %1533 = vmatmul.f32.gmra.mxu0 %v1532
        %v1534 = vpop.f32.mrf.mxu0
        %v1535 = vadd.f32 %v1479, %v1534
        %v1536 = vand.u32 %v1500, 4294901760
        %v1537 = vsub.f32 %v1500, %v1536
        %v1538 = vand.u32 %v1537, 4294901760
        %v1539 = vsub.f32 %v1537, %v1538
        %v1540 = vand.u32 %v1539, 4294901760
        %1541 = vmatmul.f32.gmra.mxu0 %v1540
        %v1542 = vpop.f32.mrf.mxu0
        %v1543 = vadd.f32 %v1484, %v1542
        %v1544 = vand.u32 %v1503, 4294901760
        %v1545 = vsub.f32 %v1503, %v1544
        %v1546 = vand.u32 %v1545, 4294901760
        %v1547 = vsub.f32 %v1545, %v1546
        %v1548 = vand.u32 %v1547, 4294901760
        %1549 = vmatmul.f32.gmra.mxu0 %v1548
        %v1550 = vpop.f32.mrf.mxu0
        %v1551 = vadd.f32 %v1489, %v1550
        %v1552 = vand.u32 %v1506, 4294901760
        %v1553 = vsub.f32 %v1506, %v1552
        %v1554 = vand.u32 %v1553, 4294901760
        %v1555 = vsub.f32 %v1553, %v1554
        %v1556 = vand.u32 %v1555, 4294901760
        %1557 = vmatmul.f32.gmra.mxu0 %v1556
        %v1558 = vpop.f32.mrf.mxu0
        %v1559 = vadd.f32 %v1494, %v1558
        %1560 = vdwg.mxu0
        %1561 = vmatpush.msra.mxu0 0.0
        %1562 = vmatpush.msra.mxu0 0.0
        %1563 = vmatpush.msra.mxu0 0.0
        %1564 = vmatpush.msra.mxu0 0.0
        %1565 = vmatpush.msra.mxu0 0.0
        %1566 = vmatpush.msra.mxu0 0.0
        %1567 = vmatpush.msra.mxu0 0.0
        %1568 = vmatpush.msra.mxu0 0.0
        %1569 = vmatpush.msra.mxu0 0.0
        %1570 = vmatpush.msra.mxu0 0.0
        %1571 = vmatpush.msra.mxu0 0.0
        %1572 = vmatpush.msra.mxu0 0.0
        %v1573 = vand.u32 %v1464, 4294901760
        %v1574 = vsub.f32 %v1464, %v1573
        %v1575 = vand.u32 %v1574, 4294901760
        %v1576 = vsub.f32 %v1574, %v1575
        %v1577 = vand.u32 %v1576, 4294901760
        %1578 = vmatpush.msra.mxu0 %v1577
        %v1579 = vand.u32 %v1460, 4294901760
        %v1580 = vsub.f32 %v1460, %v1579
        %v1581 = vand.u32 %v1580, 4294901760
        %v1582 = vsub.f32 %v1580, %v1581
        %v1583 = vand.u32 %v1582, 4294901760
        %1584 = vmatpush.msra.mxu0 %v1583
        %v1585 = vand.u32 %v1456, 4294901760
        %v1586 = vsub.f32 %v1456, %v1585
        %v1587 = vand.u32 %v1586, 4294901760
        %v1588 = vsub.f32 %v1586, %v1587
        %v1589 = vand.u32 %v1588, 4294901760
        %1590 = vmatpush.msra.mxu0 %v1589
        %v1591 = vand.u32 %v1452, 4294901760
        %v1592 = vsub.f32 %v1452, %v1591
        %v1593 = vand.u32 %v1592, 4294901760
        %v1594 = vsub.f32 %v1592, %v1593
        %v1595 = vand.u32 %v1594, 4294901760
        %1596 = vmatpush.msra.mxu0 %v1595
        %v1597 = vand.u32 %v1497, 4294901760
        %1598 = vmatmul.f32.gmra.mxu0 %v1597
        %v1599 = vpop.f32.mrf.mxu0
        %v1600 = vadd.f32 %v1535, %v1599
        %v1601 = vand.u32 %v1500, 4294901760
        %1602 = vmatmul.f32.gmra.mxu0 %v1601
        %v1603 = vpop.f32.mrf.mxu0
        %v1604 = vadd.f32 %v1543, %v1603
        %v1605 = vand.u32 %v1503, 4294901760
        %1606 = vmatmul.f32.gmra.mxu0 %v1605
        %v1607 = vpop.f32.mrf.mxu0
        %v1608 = vadd.f32 %v1551, %v1607
        %v1609 = vand.u32 %v1506, 4294901760
        %1610 = vmatmul.f32.gmra.mxu0 %v1609
        %v1611 = vpop.f32.mrf.mxu0
        %v1612 = vadd.f32 %v1559, %v1611
        %1613 = vdwg.mxu0
        %1614 = vmatpush.msra.mxu0 0.0
        %1615 = vmatpush.msra.mxu0 0.0
        %1616 = vmatpush.msra.mxu0 0.0
        %1617 = vmatpush.msra.mxu0 0.0
        %1618 = vmatpush.msra.mxu0 0.0
        %1619 = vmatpush.msra.mxu0 0.0
        %1620 = vmatpush.msra.mxu0 0.0
        %1621 = vmatpush.msra.mxu0 0.0
        %1622 = vmatpush.msra.mxu0 0.0
        %1623 = vmatpush.msra.mxu0 0.0
        %1624 = vmatpush.msra.mxu0 0.0
        %1625 = vmatpush.msra.mxu0 0.0
        %v1626 = vand.u32 %v1464, 4294901760
        %v1627 = vsub.f32 %v1464, %v1626
        %1628 = vmatpush.msra.mxu0 %v1627
        %v1629 = vand.u32 %v1460, 4294901760
        %v1630 = vsub.f32 %v1460, %v1629
        %1631 = vmatpush.msra.mxu0 %v1630
        %v1632 = vand.u32 %v1456, 4294901760
        %v1633 = vsub.f32 %v1456, %v1632
        %1634 = vmatpush.msra.mxu0 %v1633
        %v1635 = vand.u32 %v1452, 4294901760
        %v1636 = vsub.f32 %v1452, %v1635
        %1637 = vmatpush.msra.mxu0 %v1636
        %v1638 = vand.u32 %v1497, 4294901760
        %v1639 = vsub.f32 %v1497, %v1638
        %1640 = vmatmul.f32.gmra.mxu0 %v1639
        %v1641 = vpop.f32.mrf.mxu0
        %v1642 = vadd.f32 %v1600, %v1641
        %v1643 = vand.u32 %v1500, 4294901760
        %v1644 = vsub.f32 %v1500, %v1643
        %1645 = vmatmul.f32.gmra.mxu0 %v1644
        %v1646 = vpop.f32.mrf.mxu0
        %v1647 = vadd.f32 %v1604, %v1646
        %v1648 = vand.u32 %v1503, 4294901760
        %v1649 = vsub.f32 %v1503, %v1648
        %1650 = vmatmul.f32.gmra.mxu0 %v1649
        %v1651 = vpop.f32.mrf.mxu0
        %v1652 = vadd.f32 %v1608, %v1651
        %v1653 = vand.u32 %v1506, 4294901760
        %v1654 = vsub.f32 %v1506, %v1653
        %1655 = vmatmul.f32.gmra.mxu0 %v1654
        %v1656 = vpop.f32.mrf.mxu0
        %v1657 = vadd.f32 %v1612, %v1656
        %1658 = vdwg.mxu0
        %1659 = vmatpush.msra.mxu0 0.0
        %1660 = vmatpush.msra.mxu0 0.0
        %1661 = vmatpush.msra.mxu0 0.0
        %1662 = vmatpush.msra.mxu0 0.0
        %1663 = vmatpush.msra.mxu0 0.0
        %1664 = vmatpush.msra.mxu0 0.0
        %1665 = vmatpush.msra.mxu0 0.0
        %1666 = vmatpush.msra.mxu0 0.0
        %1667 = vmatpush.msra.mxu0 0.0
        %1668 = vmatpush.msra.mxu0 0.0
        %1669 = vmatpush.msra.mxu0 0.0
        %1670 = vmatpush.msra.mxu0 0.0
        %v1671 = vand.u32 %v1464, 4294901760
        %1672 = vmatpush.msra.mxu0 %v1671
        %v1673 = vand.u32 %v1460, 4294901760
        %1674 = vmatpush.msra.mxu0 %v1673
        %v1675 = vand.u32 %v1456, 4294901760
        %1676 = vmatpush.msra.mxu0 %v1675
        %v1677 = vand.u32 %v1452, 4294901760
        %1678 = vmatpush.msra.mxu0 %v1677
        %v1679 = vand.u32 %v1497, 4294901760
        %v1680 = vsub.f32 %v1497, %v1679
        %v1681 = vand.u32 %v1680, 4294901760
        %1682 = vmatmul.f32.gmra.mxu0 %v1681
        %v1683 = vpop.f32.mrf.mxu0
        %v1684 = vadd.f32 %v1642, %v1683
        %v1685 = vand.u32 %v1500, 4294901760
        %v1686 = vsub.f32 %v1500, %v1685
        %v1687 = vand.u32 %v1686, 4294901760
        %1688 = vmatmul.f32.gmra.mxu0 %v1687
        %v1689 = vpop.f32.mrf.mxu0
        %v1690 = vadd.f32 %v1647, %v1689
        %v1691 = vand.u32 %v1503, 4294901760
        %v1692 = vsub.f32 %v1503, %v1691
        %v1693 = vand.u32 %v1692, 4294901760
        %1694 = vmatmul.f32.gmra.mxu0 %v1693
        %v1695 = vpop.f32.mrf.mxu0
        %v1696 = vadd.f32 %v1652, %v1695
        %v1697 = vand.u32 %v1506, 4294901760
        %v1698 = vsub.f32 %v1506, %v1697
        %v1699 = vand.u32 %v1698, 4294901760
        %1700 = vmatmul.f32.gmra.mxu0 %v1699
        %v1701 = vpop.f32.mrf.mxu0
        %v1702 = vadd.f32 %v1657, %v1701
        %1703 = vdwg.mxu0
        %1704 = vmatpush.msra.mxu0 0.0
        %1705 = vmatpush.msra.mxu0 0.0
        %1706 = vmatpush.msra.mxu0 0.0
        %1707 = vmatpush.msra.mxu0 0.0
        %1708 = vmatpush.msra.mxu0 0.0
        %1709 = vmatpush.msra.mxu0 0.0
        %1710 = vmatpush.msra.mxu0 0.0
        %1711 = vmatpush.msra.mxu0 0.0
        %1712 = vmatpush.msra.mxu0 0.0
        %1713 = vmatpush.msra.mxu0 0.0
        %1714 = vmatpush.msra.mxu0 0.0
        %1715 = vmatpush.msra.mxu0 0.0
        %v1716 = vand.u32 %v1464, 4294901760
        %v1717 = vsub.f32 %v1464, %v1716
        %v1718 = vand.u32 %v1717, 4294901760
        %1719 = vmatpush.msra.mxu0 %v1718
        %v1720 = vand.u32 %v1460, 4294901760
        %v1721 = vsub.f32 %v1460, %v1720
        %v1722 = vand.u32 %v1721, 4294901760
        %1723 = vmatpush.msra.mxu0 %v1722
        %v1724 = vand.u32 %v1456, 4294901760
        %v1725 = vsub.f32 %v1456, %v1724
        %v1726 = vand.u32 %v1725, 4294901760
        %1727 = vmatpush.msra.mxu0 %v1726
        %v1728 = vand.u32 %v1452, 4294901760
        %v1729 = vsub.f32 %v1452, %v1728
        %v1730 = vand.u32 %v1729, 4294901760
        %1731 = vmatpush.msra.mxu0 %v1730
        %v1732 = vand.u32 %v1497, 4294901760
        %1733 = vmatmul.f32.gmra.mxu0 %v1732
        %v1734 = vpop.f32.mrf.mxu0
        %v1735 = vadd.f32 %v1684, %v1734
        %v1736 = vand.u32 %v1500, 4294901760
        %1737 = vmatmul.f32.gmra.mxu0 %v1736
        %v1738 = vpop.f32.mrf.mxu0
        %v1739 = vadd.f32 %v1690, %v1738
        %v1740 = vand.u32 %v1503, 4294901760
        %1741 = vmatmul.f32.gmra.mxu0 %v1740
        %v1742 = vpop.f32.mrf.mxu0
        %v1743 = vadd.f32 %v1696, %v1742
        %v1744 = vand.u32 %v1506, 4294901760
        %1745 = vmatmul.f32.gmra.mxu0 %v1744
        %v1746 = vpop.f32.mrf.mxu0
        %v1747 = vadd.f32 %v1702, %v1746
        %1748 = vdwg.mxu0
        %1749 = vmatpush.msra.mxu0 0.0
        %1750 = vmatpush.msra.mxu0 0.0
        %1751 = vmatpush.msra.mxu0 0.0
        %1752 = vmatpush.msra.mxu0 0.0
        %1753 = vmatpush.msra.mxu0 0.0
        %1754 = vmatpush.msra.mxu0 0.0
        %1755 = vmatpush.msra.mxu0 0.0
        %1756 = vmatpush.msra.mxu0 0.0
        %1757 = vmatpush.msra.mxu0 0.0
        %1758 = vmatpush.msra.mxu0 0.0
        %1759 = vmatpush.msra.mxu0 0.0
        %1760 = vmatpush.msra.mxu0 0.0
        %v1761 = vand.u32 %v1464, 4294901760
        %1762 = vmatpush.msra.mxu0 %v1761
        %v1763 = vand.u32 %v1460, 4294901760
        %1764 = vmatpush.msra.mxu0 %v1763
        %v1765 = vand.u32 %v1456, 4294901760
        %1766 = vmatpush.msra.mxu0 %v1765
        %v1767 = vand.u32 %v1452, 4294901760
        %1768 = vmatpush.msra.mxu0 %v1767
        %v1769 = vand.u32 %v1497, 4294901760
        %1770 = vmatmul.f32.gmra.mxu0 %v1769
        %v1771 = vpop.f32.mrf.mxu0
        %v1772 = vadd.f32 %v1735, %v1771
        %v1773 = vand.u32 %v1500, 4294901760
        %1774 = vmatmul.f32.gmra.mxu0 %v1773
        %v1775 = vpop.f32.mrf.mxu0
        %v1776 = vadd.f32 %v1739, %v1775
        %v1777 = vand.u32 %v1503, 4294901760
        %1778 = vmatmul.f32.gmra.mxu0 %v1777
        %v1779 = vpop.f32.mrf.mxu0
        %v1780 = vadd.f32 %v1743, %v1779
        %v1781 = vand.u32 %v1506, 4294901760
        %1782 = vmatmul.f32.gmra.mxu0 %v1781
        %v1783 = vpop.f32.mrf.mxu0
        %v1784 = vadd.f32 %v1747, %v1783
        %1785 = vdwg.mxu0
        %v1786 = vtanh.pop %v1772
        %v1787 = vtanh.pop %v1776
        %v1788 = vtanh.pop %v1780
        %v1789 = vtanh.pop %v1784
        %s1790 = scalar_lea.vmem %s1, 160
        %v1791 = vld [vmem:[%s1790] sm:$0xff]
        %v1792 = vld [vmem:[%s1790 + $0x8] sm:$0xff]
        %v1793 = vld [vmem:[%s1790 + $0x10] sm:$0xff]
        %v1794 = vld [vmem:[%s1790 + $0x18] sm:$0xff]
        %s1795 = scalar_lea.vmem %s2, 160
        %v1796 = vld [vmem:[%s1795] sm:$0xff]
        %v1797 = vld [vmem:[%s1795 + $0x8] sm:$0xff]
        %v1798 = vld [vmem:[%s1795 + $0x10] sm:$0xff]
        %v1799 = vld [vmem:[%s1795 + $0x18] sm:$0xff]
        %1801 = vset.pattern.permute.xlu0 0
        %1802 = vperm.xlu0 %1801, %v1796
        %v1803 = vpop.permute.xlu0 %1802
        %1806 = vset.pattern.permute.xlu0 0
        %1807 = vperm.xlu0 %1806, %v1797
        %v1808 = vpop.permute.xlu0 %1807
        %1811 = vset.pattern.permute.xlu0 0
        %1812 = vperm.xlu0 %1811, %v1798
        %v1813 = vpop.permute.xlu0 %1812
        %1816 = vset.pattern.permute.xlu0 0
        %1817 = vperm.xlu0 %1816, %v1799
        %v1818 = vpop.permute.xlu0 %1817
        %v1821 = vsel %vm519, %v1791, 0
        %v1824 = vsel %vm519, %v1792, 0
        %v1827 = vsel %vm519, %v1793, 0
        %v1830 = vsel %vm519, %v1794, 0
        %1832 = vmatpush.msra.mxu0 0.0
        %1833 = vmatpush.msra.mxu0 0.0
        %1834 = vmatpush.msra.mxu0 0.0
        %1835 = vmatpush.msra.mxu0 0.0
        %1836 = vmatpush.msra.mxu0 0.0
        %1837 = vmatpush.msra.mxu0 0.0
        %1838 = vmatpush.msra.mxu0 0.0
        %1839 = vmatpush.msra.mxu0 0.0
        %1840 = vmatpush.msra.mxu0 0.0
        %1841 = vmatpush.msra.mxu0 0.0
        %1842 = vmatpush.msra.mxu0 0.0
        %1843 = vmatpush.msra.mxu0 0.0
        %v1844 = vand.u32 %v1789, 4294901760
        %1845 = vmatpush.msra.mxu0 %v1844
        %v1846 = vand.u32 %v1788, 4294901760
        %1847 = vmatpush.msra.mxu0 %v1846
        %v1848 = vand.u32 %v1787, 4294901760
        %1849 = vmatpush.msra.mxu0 %v1848
        %v1850 = vand.u32 %v1786, 4294901760
        %1851 = vmatpush.msra.mxu0 %v1850
        %v1852 = vand.u32 %v1821, 4294901760
        %v1853 = vsub.f32 %v1821, %v1852
        %v1854 = vand.u32 %v1853, 4294901760
        %v1855 = vsub.f32 %v1853, %v1854
        %v1856 = vand.u32 %v1855, 4294901760
        %1857 = vmatmul.f32.gmra.mxu0 %v1856
        %v1858 = vpop.f32.mrf.mxu0
        %v1859 = vadd.f32 %v1803, %v1858
        %v1860 = vand.u32 %v1824, 4294901760
        %v1861 = vsub.f32 %v1824, %v1860
        %v1862 = vand.u32 %v1861, 4294901760
        %v1863 = vsub.f32 %v1861, %v1862
        %v1864 = vand.u32 %v1863, 4294901760
        %1865 = vmatmul.f32.gmra.mxu0 %v1864
        %v1866 = vpop.f32.mrf.mxu0
        %v1867 = vadd.f32 %v1808, %v1866
        %v1868 = vand.u32 %v1827, 4294901760
        %v1869 = vsub.f32 %v1827, %v1868
        %v1870 = vand.u32 %v1869, 4294901760
        %v1871 = vsub.f32 %v1869, %v1870
        %v1872 = vand.u32 %v1871, 4294901760
        %1873 = vmatmul.f32.gmra.mxu0 %v1872
        %v1874 = vpop.f32.mrf.mxu0
        %v1875 = vadd.f32 %v1813, %v1874
        %v1876 = vand.u32 %v1830, 4294901760
        %v1877 = vsub.f32 %v1830, %v1876
        %v1878 = vand.u32 %v1877, 4294901760
        %v1879 = vsub.f32 %v1877, %v1878
        %v1880 = vand.u32 %v1879, 4294901760
        %1881 = vmatmul.f32.gmra.mxu0 %v1880
        %v1882 = vpop.f32.mrf.mxu0
        %v1883 = vadd.f32 %v1818, %v1882
        %1884 = vdwg.mxu0
        %1885 = vmatpush.msra.mxu0 0.0
        %1886 = vmatpush.msra.mxu0 0.0
        %1887 = vmatpush.msra.mxu0 0.0
        %1888 = vmatpush.msra.mxu0 0.0
        %1889 = vmatpush.msra.mxu0 0.0
        %1890 = vmatpush.msra.mxu0 0.0
        %1891 = vmatpush.msra.mxu0 0.0
        %1892 = vmatpush.msra.mxu0 0.0
        %1893 = vmatpush.msra.mxu0 0.0
        %1894 = vmatpush.msra.mxu0 0.0
        %1895 = vmatpush.msra.mxu0 0.0
        %1896 = vmatpush.msra.mxu0 0.0
        %v1897 = vand.u32 %v1789, 4294901760
        %v1898 = vsub.f32 %v1789, %v1897
        %v1899 = vand.u32 %v1898, 4294901760
        %v1900 = vsub.f32 %v1898, %v1899
        %v1901 = vand.u32 %v1900, 4294901760
        %1902 = vmatpush.msra.mxu0 %v1901
        %v1903 = vand.u32 %v1788, 4294901760
        %v1904 = vsub.f32 %v1788, %v1903
        %v1905 = vand.u32 %v1904, 4294901760
        %v1906 = vsub.f32 %v1904, %v1905
        %v1907 = vand.u32 %v1906, 4294901760
        %1908 = vmatpush.msra.mxu0 %v1907
        %v1909 = vand.u32 %v1787, 4294901760
        %v1910 = vsub.f32 %v1787, %v1909
        %v1911 = vand.u32 %v1910, 4294901760
        %v1912 = vsub.f32 %v1910, %v1911
        %v1913 = vand.u32 %v1912, 4294901760
        %1914 = vmatpush.msra.mxu0 %v1913
        %v1915 = vand.u32 %v1786, 4294901760
        %v1916 = vsub.f32 %v1786, %v1915
        %v1917 = vand.u32 %v1916, 4294901760
        %v1918 = vsub.f32 %v1916, %v1917
        %v1919 = vand.u32 %v1918, 4294901760
        %1920 = vmatpush.msra.mxu0 %v1919
        %v1921 = vand.u32 %v1821, 4294901760
        %1922 = vmatmul.f32.gmra.mxu0 %v1921
        %v1923 = vpop.f32.mrf.mxu0
        %v1924 = vadd.f32 %v1859, %v1923
        %v1925 = vand.u32 %v1824, 4294901760
        %1926 = vmatmul.f32.gmra.mxu0 %v1925
        %v1927 = vpop.f32.mrf.mxu0
        %v1928 = vadd.f32 %v1867, %v1927
        %v1929 = vand.u32 %v1827, 4294901760
        %1930 = vmatmul.f32.gmra.mxu0 %v1929
        %v1931 = vpop.f32.mrf.mxu0
        %v1932 = vadd.f32 %v1875, %v1931
        %v1933 = vand.u32 %v1830, 4294901760
        %1934 = vmatmul.f32.gmra.mxu0 %v1933
        %v1935 = vpop.f32.mrf.mxu0
        %v1936 = vadd.f32 %v1883, %v1935
        %1937 = vdwg.mxu0
        %1938 = vmatpush.msra.mxu0 0.0
        %1939 = vmatpush.msra.mxu0 0.0
        %1940 = vmatpush.msra.mxu0 0.0
        %1941 = vmatpush.msra.mxu0 0.0
        %1942 = vmatpush.msra.mxu0 0.0
        %1943 = vmatpush.msra.mxu0 0.0
        %1944 = vmatpush.msra.mxu0 0.0
        %1945 = vmatpush.msra.mxu0 0.0
        %1946 = vmatpush.msra.mxu0 0.0
        %1947 = vmatpush.msra.mxu0 0.0
        %1948 = vmatpush.msra.mxu0 0.0
        %1949 = vmatpush.msra.mxu0 0.0
        %v1950 = vand.u32 %v1789, 4294901760
        %v1951 = vsub.f32 %v1789, %v1950
        %1952 = vmatpush.msra.mxu0 %v1951
        %v1953 = vand.u32 %v1788, 4294901760
        %v1954 = vsub.f32 %v1788, %v1953
        %1955 = vmatpush.msra.mxu0 %v1954
        %v1956 = vand.u32 %v1787, 4294901760
        %v1957 = vsub.f32 %v1787, %v1956
        %1958 = vmatpush.msra.mxu0 %v1957
        %v1959 = vand.u32 %v1786, 4294901760
        %v1960 = vsub.f32 %v1786, %v1959
        %1961 = vmatpush.msra.mxu0 %v1960
        %v1962 = vand.u32 %v1821, 4294901760
        %v1963 = vsub.f32 %v1821, %v1962
        %1964 = vmatmul.f32.gmra.mxu0 %v1963
        %v1965 = vpop.f32.mrf.mxu0
        %v1966 = vadd.f32 %v1924, %v1965
        %v1967 = vand.u32 %v1824, 4294901760
        %v1968 = vsub.f32 %v1824, %v1967
        %1969 = vmatmul.f32.gmra.mxu0 %v1968
        %v1970 = vpop.f32.mrf.mxu0
        %v1971 = vadd.f32 %v1928, %v1970
        %v1972 = vand.u32 %v1827, 4294901760
        %v1973 = vsub.f32 %v1827, %v1972
        %1974 = vmatmul.f32.gmra.mxu0 %v1973
        %v1975 = vpop.f32.mrf.mxu0
        %v1976 = vadd.f32 %v1932, %v1975
        %v1977 = vand.u32 %v1830, 4294901760
        %v1978 = vsub.f32 %v1830, %v1977
        %1979 = vmatmul.f32.gmra.mxu0 %v1978
        %v1980 = vpop.f32.mrf.mxu0
        %v1981 = vadd.f32 %v1936, %v1980
        %1982 = vdwg.mxu0
        %1983 = vmatpush.msra.mxu0 0.0
        %1984 = vmatpush.msra.mxu0 0.0
        %1985 = vmatpush.msra.mxu0 0.0
        %1986 = vmatpush.msra.mxu0 0.0
        %1987 = vmatpush.msra.mxu0 0.0
        %1988 = vmatpush.msra.mxu0 0.0
        %1989 = vmatpush.msra.mxu0 0.0
        %1990 = vmatpush.msra.mxu0 0.0
        %1991 = vmatpush.msra.mxu0 0.0
        %1992 = vmatpush.msra.mxu0 0.0
        %1993 = vmatpush.msra.mxu0 0.0
        %1994 = vmatpush.msra.mxu0 0.0
        %v1995 = vand.u32 %v1789, 4294901760
        %1996 = vmatpush.msra.mxu0 %v1995
        %v1997 = vand.u32 %v1788, 4294901760
        %1998 = vmatpush.msra.mxu0 %v1997
        %v1999 = vand.u32 %v1787, 4294901760
        %2000 = vmatpush.msra.mxu0 %v1999
        %v2001 = vand.u32 %v1786, 4294901760
        %2002 = vmatpush.msra.mxu0 %v2001
        %v2003 = vand.u32 %v1821, 4294901760
        %v2004 = vsub.f32 %v1821, %v2003
        %v2005 = vand.u32 %v2004, 4294901760
        %2006 = vmatmul.f32.gmra.mxu0 %v2005
        %v2007 = vpop.f32.mrf.mxu0
        %v2008 = vadd.f32 %v1966, %v2007
        %v2009 = vand.u32 %v1824, 4294901760
        %v2010 = vsub.f32 %v1824, %v2009
        %v2011 = vand.u32 %v2010, 4294901760
        %2012 = vmatmul.f32.gmra.mxu0 %v2011
        %v2013 = vpop.f32.mrf.mxu0
        %v2014 = vadd.f32 %v1971, %v2013
        %v2015 = vand.u32 %v1827, 4294901760
        %v2016 = vsub.f32 %v1827, %v2015
        %v2017 = vand.u32 %v2016, 4294901760
        %2018 = vmatmul.f32.gmra.mxu0 %v2017
        %v2019 = vpop.f32.mrf.mxu0
        %v2020 = vadd.f32 %v1976, %v2019
        %v2021 = vand.u32 %v1830, 4294901760
        %v2022 = vsub.f32 %v1830, %v2021
        %v2023 = vand.u32 %v2022, 4294901760
        %2024 = vmatmul.f32.gmra.mxu0 %v2023
        %v2025 = vpop.f32.mrf.mxu0
        %v2026 = vadd.f32 %v1981, %v2025
        %2027 = vdwg.mxu0
        %2028 = vmatpush.msra.mxu0 0.0
        %2029 = vmatpush.msra.mxu0 0.0
        %2030 = vmatpush.msra.mxu0 0.0
        %2031 = vmatpush.msra.mxu0 0.0
        %2032 = vmatpush.msra.mxu0 0.0
        %2033 = vmatpush.msra.mxu0 0.0
        %2034 = vmatpush.msra.mxu0 0.0
        %2035 = vmatpush.msra.mxu0 0.0
        %2036 = vmatpush.msra.mxu0 0.0
        %2037 = vmatpush.msra.mxu0 0.0
        %2038 = vmatpush.msra.mxu0 0.0
        %2039 = vmatpush.msra.mxu0 0.0
        %v2040 = vand.u32 %v1789, 4294901760
        %v2041 = vsub.f32 %v1789, %v2040
        %v2042 = vand.u32 %v2041, 4294901760
        %2043 = vmatpush.msra.mxu0 %v2042
        %v2044 = vand.u32 %v1788, 4294901760
        %v2045 = vsub.f32 %v1788, %v2044
        %v2046 = vand.u32 %v2045, 4294901760
        %2047 = vmatpush.msra.mxu0 %v2046
        %v2048 = vand.u32 %v1787, 4294901760
        %v2049 = vsub.f32 %v1787, %v2048
        %v2050 = vand.u32 %v2049, 4294901760
        %2051 = vmatpush.msra.mxu0 %v2050
        %v2052 = vand.u32 %v1786, 4294901760
        %v2053 = vsub.f32 %v1786, %v2052
        %v2054 = vand.u32 %v2053, 4294901760
        %2055 = vmatpush.msra.mxu0 %v2054
        %v2056 = vand.u32 %v1821, 4294901760
        %2057 = vmatmul.f32.gmra.mxu0 %v2056
        %v2058 = vpop.f32.mrf.mxu0
        %v2059 = vadd.f32 %v2008, %v2058
        %v2060 = vand.u32 %v1824, 4294901760
        %2061 = vmatmul.f32.gmra.mxu0 %v2060
        %v2062 = vpop.f32.mrf.mxu0
        %v2063 = vadd.f32 %v2014, %v2062
        %v2064 = vand.u32 %v1827, 4294901760
        %2065 = vmatmul.f32.gmra.mxu0 %v2064
        %v2066 = vpop.f32.mrf.mxu0
        %v2067 = vadd.f32 %v2020, %v2066
        %v2068 = vand.u32 %v1830, 4294901760
        %2069 = vmatmul.f32.gmra.mxu0 %v2068
        %v2070 = vpop.f32.mrf.mxu0
        %v2071 = vadd.f32 %v2026, %v2070
        %2072 = vdwg.mxu0
        %2073 = vmatpush.msra.mxu0 0.0
        %2074 = vmatpush.msra.mxu0 0.0
        %2075 = vmatpush.msra.mxu0 0.0
        %2076 = vmatpush.msra.mxu0 0.0
        %2077 = vmatpush.msra.mxu0 0.0
        %2078 = vmatpush.msra.mxu0 0.0
        %2079 = vmatpush.msra.mxu0 0.0
        %2080 = vmatpush.msra.mxu0 0.0
        %2081 = vmatpush.msra.mxu0 0.0
        %2082 = vmatpush.msra.mxu0 0.0
        %2083 = vmatpush.msra.mxu0 0.0
        %2084 = vmatpush.msra.mxu0 0.0
        %v2085 = vand.u32 %v1789, 4294901760
        %2086 = vmatpush.msra.mxu0 %v2085
        %v2087 = vand.u32 %v1788, 4294901760
        %2088 = vmatpush.msra.mxu0 %v2087
        %v2089 = vand.u32 %v1787, 4294901760
        %2090 = vmatpush.msra.mxu0 %v2089
        %v2091 = vand.u32 %v1786, 4294901760
        %2092 = vmatpush.msra.mxu0 %v2091
        %v2093 = vand.u32 %v1821, 4294901760
        %2094 = vmatmul.f32.gmra.mxu0 %v2093
        %v2095 = vpop.f32.mrf.mxu0
        %v2096 = vadd.f32 %v2059, %v2095
        %v2097 = vand.u32 %v1824, 4294901760
        %2098 = vmatmul.f32.gmra.mxu0 %v2097
        %v2099 = vpop.f32.mrf.mxu0
        %v2100 = vadd.f32 %v2063, %v2099
        %v2101 = vand.u32 %v1827, 4294901760
        %2102 = vmatmul.f32.gmra.mxu0 %v2101
        %v2103 = vpop.f32.mrf.mxu0
        %v2104 = vadd.f32 %v2067, %v2103
        %v2105 = vand.u32 %v1830, 4294901760
        %2106 = vmatmul.f32.gmra.mxu0 %v2105
        %v2107 = vpop.f32.mrf.mxu0
        %v2108 = vadd.f32 %v2071, %v2107
        %2109 = vdwg.mxu0
        %v2110 = vtanh.pop %v2096
        %v2111 = vtanh.pop %v2100
        %v2112 = vtanh.pop %v2104
        %v2113 = vtanh.pop %v2108
        %v2114 = vadd.f32 %v1786, %v2110
        %v2115 = vadd.f32 %v1787, %v2111
        %v2116 = vadd.f32 %v1788, %v2112
        %v2117 = vadd.f32 %v1789, %v2113
        %s2118 = scalar_lea.vmem %s1, 192
        %v2119 = vld [vmem:[%s2118] sm:$0xff]
        %v2120 = vld [vmem:[%s2118 + $0x8] sm:$0xff]
        %v2121 = vld [vmem:[%s2118 + $0x10] sm:$0xff]
        %v2122 = vld [vmem:[%s2118 + $0x18] sm:$0xff]
        %s2123 = scalar_lea.vmem %s2, 192
        %v2124 = vld [vmem:[%s2123] sm:$0xff]
        %v2125 = vld [vmem:[%s2123 + $0x8] sm:$0xff]
        %v2126 = vld [vmem:[%s2123 + $0x10] sm:$0xff]
        %v2127 = vld [vmem:[%s2123 + $0x18] sm:$0xff]
        %2129 = vset.pattern.permute.xlu0 0
        %2130 = vperm.xlu0 %2129, %v2124
        %v2131 = vpop.permute.xlu0 %2130
        %2134 = vset.pattern.permute.xlu0 0
        %2135 = vperm.xlu0 %2134, %v2125
        %v2136 = vpop.permute.xlu0 %2135
        %2139 = vset.pattern.permute.xlu0 0
        %2140 = vperm.xlu0 %2139, %v2126
        %v2141 = vpop.permute.xlu0 %2140
        %2144 = vset.pattern.permute.xlu0 0
        %2145 = vperm.xlu0 %2144, %v2127
        %v2146 = vpop.permute.xlu0 %2145
        %v2149 = vsel %vm519, %v2119, 0
        %v2152 = vsel %vm519, %v2120, 0
        %v2155 = vsel %vm519, %v2121, 0
        %v2158 = vsel %vm519, %v2122, 0
        %2160 = vmatpush.msra.mxu0 0.0
        %2161 = vmatpush.msra.mxu0 0.0
        %2162 = vmatpush.msra.mxu0 0.0
        %2163 = vmatpush.msra.mxu0 0.0
        %2164 = vmatpush.msra.mxu0 0.0
        %2165 = vmatpush.msra.mxu0 0.0
        %2166 = vmatpush.msra.mxu0 0.0
        %2167 = vmatpush.msra.mxu0 0.0
        %2168 = vmatpush.msra.mxu0 0.0
        %2169 = vmatpush.msra.mxu0 0.0
        %2170 = vmatpush.msra.mxu0 0.0
        %2171 = vmatpush.msra.mxu0 0.0
        %v2172 = vand.u32 %v2117, 4294901760
        %2173 = vmatpush.msra.mxu0 %v2172
        %v2174 = vand.u32 %v2116, 4294901760
        %2175 = vmatpush.msra.mxu0 %v2174
        %v2176 = vand.u32 %v2115, 4294901760
        %2177 = vmatpush.msra.mxu0 %v2176
        %v2178 = vand.u32 %v2114, 4294901760
        %2179 = vmatpush.msra.mxu0 %v2178
        %v2180 = vand.u32 %v2149, 4294901760
        %v2181 = vsub.f32 %v2149, %v2180
        %v2182 = vand.u32 %v2181, 4294901760
        %v2183 = vsub.f32 %v2181, %v2182
        %v2184 = vand.u32 %v2183, 4294901760
        %2185 = vmatmul.f32.gmra.mxu0 %v2184
        %v2186 = vpop.f32.mrf.mxu0
        %v2187 = vadd.f32 %v2131, %v2186
        %v2188 = vand.u32 %v2152, 4294901760
        %v2189 = vsub.f32 %v2152, %v2188
        %v2190 = vand.u32 %v2189, 4294901760
        %v2191 = vsub.f32 %v2189, %v2190
        %v2192 = vand.u32 %v2191, 4294901760
        %2193 = vmatmul.f32.gmra.mxu0 %v2192
        %v2194 = vpop.f32.mrf.mxu0
        %v2195 = vadd.f32 %v2136, %v2194
        %v2196 = vand.u32 %v2155, 4294901760
        %v2197 = vsub.f32 %v2155, %v2196
        %v2198 = vand.u32 %v2197, 4294901760
        %v2199 = vsub.f32 %v2197, %v2198
        %v2200 = vand.u32 %v2199, 4294901760
        %2201 = vmatmul.f32.gmra.mxu0 %v2200
        %v2202 = vpop.f32.mrf.mxu0
        %v2203 = vadd.f32 %v2141, %v2202
        %v2204 = vand.u32 %v2158, 4294901760
        %v2205 = vsub.f32 %v2158, %v2204
        %v2206 = vand.u32 %v2205, 4294901760
        %v2207 = vsub.f32 %v2205, %v2206
        %v2208 = vand.u32 %v2207, 4294901760
        %2209 = vmatmul.f32.gmra.mxu0 %v2208
        %v2210 = vpop.f32.mrf.mxu0
        %v2211 = vadd.f32 %v2146, %v2210
        %2212 = vdwg.mxu0
        %2213 = vmatpush.msra.mxu0 0.0
        %2214 = vmatpush.msra.mxu0 0.0
        %2215 = vmatpush.msra.mxu0 0.0
        %2216 = vmatpush.msra.mxu0 0.0
        %2217 = vmatpush.msra.mxu0 0.0
        %2218 = vmatpush.msra.mxu0 0.0
        %2219 = vmatpush.msra.mxu0 0.0
        %2220 = vmatpush.msra.mxu0 0.0
        %2221 = vmatpush.msra.mxu0 0.0
        %2222 = vmatpush.msra.mxu0 0.0
        %2223 = vmatpush.msra.mxu0 0.0
        %2224 = vmatpush.msra.mxu0 0.0
        %v2225 = vand.u32 %v2117, 4294901760
        %v2226 = vsub.f32 %v2117, %v2225
        %v2227 = vand.u32 %v2226, 4294901760
        %v2228 = vsub.f32 %v2226, %v2227
        %v2229 = vand.u32 %v2228, 4294901760
        %2230 = vmatpush.msra.mxu0 %v2229
        %v2231 = vand.u32 %v2116, 4294901760
        %v2232 = vsub.f32 %v2116, %v2231
        %v2233 = vand.u32 %v2232, 4294901760
        %v2234 = vsub.f32 %v2232, %v2233
        %v2235 = vand.u32 %v2234, 4294901760
        %2236 = vmatpush.msra.mxu0 %v2235
        %v2237 = vand.u32 %v2115, 4294901760
        %v2238 = vsub.f32 %v2115, %v2237
        %v2239 = vand.u32 %v2238, 4294901760
        %v2240 = vsub.f32 %v2238, %v2239
        %v2241 = vand.u32 %v2240, 4294901760
        %2242 = vmatpush.msra.mxu0 %v2241
        %v2243 = vand.u32 %v2114, 4294901760
        %v2244 = vsub.f32 %v2114, %v2243
        %v2245 = vand.u32 %v2244, 4294901760
        %v2246 = vsub.f32 %v2244, %v2245
        %v2247 = vand.u32 %v2246, 4294901760
        %2248 = vmatpush.msra.mxu0 %v2247
        %v2249 = vand.u32 %v2149, 4294901760
        %2250 = vmatmul.f32.gmra.mxu0 %v2249
        %v2251 = vpop.f32.mrf.mxu0
        %v2252 = vadd.f32 %v2187, %v2251
        %v2253 = vand.u32 %v2152, 4294901760
        %2254 = vmatmul.f32.gmra.mxu0 %v2253
        %v2255 = vpop.f32.mrf.mxu0
        %v2256 = vadd.f32 %v2195, %v2255
        %v2257 = vand.u32 %v2155, 4294901760
        %2258 = vmatmul.f32.gmra.mxu0 %v2257
        %v2259 = vpop.f32.mrf.mxu0
        %v2260 = vadd.f32 %v2203, %v2259
        %v2261 = vand.u32 %v2158, 4294901760
        %2262 = vmatmul.f32.gmra.mxu0 %v2261
        %v2263 = vpop.f32.mrf.mxu0
        %v2264 = vadd.f32 %v2211, %v2263
        %2265 = vdwg.mxu0
        %2266 = vmatpush.msra.mxu0 0.0
        %2267 = vmatpush.msra.mxu0 0.0
        %2268 = vmatpush.msra.mxu0 0.0
        %2269 = vmatpush.msra.mxu0 0.0
        %2270 = vmatpush.msra.mxu0 0.0
        %2271 = vmatpush.msra.mxu0 0.0
        %2272 = vmatpush.msra.mxu0 0.0
        %2273 = vmatpush.msra.mxu0 0.0
        %2274 = vmatpush.msra.mxu0 0.0
        %2275 = vmatpush.msra.mxu0 0.0
        %2276 = vmatpush.msra.mxu0 0.0
        %2277 = vmatpush.msra.mxu0 0.0
        %v2278 = vand.u32 %v2117, 4294901760
        %v2279 = vsub.f32 %v2117, %v2278
        %2280 = vmatpush.msra.mxu0 %v2279
        %v2281 = vand.u32 %v2116, 4294901760
        %v2282 = vsub.f32 %v2116, %v2281
        %2283 = vmatpush.msra.mxu0 %v2282
        %v2284 = vand.u32 %v2115, 4294901760
        %v2285 = vsub.f32 %v2115, %v2284
        %2286 = vmatpush.msra.mxu0 %v2285
        %v2287 = vand.u32 %v2114, 4294901760
        %v2288 = vsub.f32 %v2114, %v2287
        %2289 = vmatpush.msra.mxu0 %v2288
        %v2290 = vand.u32 %v2149, 4294901760
        %v2291 = vsub.f32 %v2149, %v2290
        %2292 = vmatmul.f32.gmra.mxu0 %v2291
        %v2293 = vpop.f32.mrf.mxu0
        %v2294 = vadd.f32 %v2252, %v2293
        %v2295 = vand.u32 %v2152, 4294901760
        %v2296 = vsub.f32 %v2152, %v2295
        %2297 = vmatmul.f32.gmra.mxu0 %v2296
        %v2298 = vpop.f32.mrf.mxu0
        %v2299 = vadd.f32 %v2256, %v2298
        %v2300 = vand.u32 %v2155, 4294901760
        %v2301 = vsub.f32 %v2155, %v2300
        %2302 = vmatmul.f32.gmra.mxu0 %v2301
        %v2303 = vpop.f32.mrf.mxu0
        %v2304 = vadd.f32 %v2260, %v2303
        %v2305 = vand.u32 %v2158, 4294901760
        %v2306 = vsub.f32 %v2158, %v2305
        %2307 = vmatmul.f32.gmra.mxu0 %v2306
        %v2308 = vpop.f32.mrf.mxu0
        %v2309 = vadd.f32 %v2264, %v2308
        %2310 = vdwg.mxu0
        %2311 = vmatpush.msra.mxu0 0.0
        %2312 = vmatpush.msra.mxu0 0.0
        %2313 = vmatpush.msra.mxu0 0.0
        %2314 = vmatpush.msra.mxu0 0.0
        %2315 = vmatpush.msra.mxu0 0.0
        %2316 = vmatpush.msra.mxu0 0.0
        %2317 = vmatpush.msra.mxu0 0.0
        %2318 = vmatpush.msra.mxu0 0.0
        %2319 = vmatpush.msra.mxu0 0.0
        %2320 = vmatpush.msra.mxu0 0.0
        %2321 = vmatpush.msra.mxu0 0.0
        %2322 = vmatpush.msra.mxu0 0.0
        %v2323 = vand.u32 %v2117, 4294901760
        %2324 = vmatpush.msra.mxu0 %v2323
        %v2325 = vand.u32 %v2116, 4294901760
        %2326 = vmatpush.msra.mxu0 %v2325
        %v2327 = vand.u32 %v2115, 4294901760
        %2328 = vmatpush.msra.mxu0 %v2327
        %v2329 = vand.u32 %v2114, 4294901760
        %2330 = vmatpush.msra.mxu0 %v2329
        %v2331 = vand.u32 %v2149, 4294901760
        %v2332 = vsub.f32 %v2149, %v2331
        %v2333 = vand.u32 %v2332, 4294901760
        %2334 = vmatmul.f32.gmra.mxu0 %v2333
        %v2335 = vpop.f32.mrf.mxu0
        %v2336 = vadd.f32 %v2294, %v2335
        %v2337 = vand.u32 %v2152, 4294901760
        %v2338 = vsub.f32 %v2152, %v2337
        %v2339 = vand.u32 %v2338, 4294901760
        %2340 = vmatmul.f32.gmra.mxu0 %v2339
        %v2341 = vpop.f32.mrf.mxu0
        %v2342 = vadd.f32 %v2299, %v2341
        %v2343 = vand.u32 %v2155, 4294901760
        %v2344 = vsub.f32 %v2155, %v2343
        %v2345 = vand.u32 %v2344, 4294901760
        %2346 = vmatmul.f32.gmra.mxu0 %v2345
        %v2347 = vpop.f32.mrf.mxu0
        %v2348 = vadd.f32 %v2304, %v2347
        %v2349 = vand.u32 %v2158, 4294901760
        %v2350 = vsub.f32 %v2158, %v2349
        %v2351 = vand.u32 %v2350, 4294901760
        %2352 = vmatmul.f32.gmra.mxu0 %v2351
        %v2353 = vpop.f32.mrf.mxu0
        %v2354 = vadd.f32 %v2309, %v2353
        %2355 = vdwg.mxu0
        %2356 = vmatpush.msra.mxu0 0.0
        %2357 = vmatpush.msra.mxu0 0.0
        %2358 = vmatpush.msra.mxu0 0.0
        %2359 = vmatpush.msra.mxu0 0.0
        %2360 = vmatpush.msra.mxu0 0.0
        %2361 = vmatpush.msra.mxu0 0.0
        %2362 = vmatpush.msra.mxu0 0.0
        %2363 = vmatpush.msra.mxu0 0.0
        %2364 = vmatpush.msra.mxu0 0.0
        %2365 = vmatpush.msra.mxu0 0.0
        %2366 = vmatpush.msra.mxu0 0.0
        %2367 = vmatpush.msra.mxu0 0.0
        %v2368 = vand.u32 %v2117, 4294901760
        %v2369 = vsub.f32 %v2117, %v2368
        %v2370 = vand.u32 %v2369, 4294901760
        %2371 = vmatpush.msra.mxu0 %v2370
        %v2372 = vand.u32 %v2116, 4294901760
        %v2373 = vsub.f32 %v2116, %v2372
        %v2374 = vand.u32 %v2373, 4294901760
        %2375 = vmatpush.msra.mxu0 %v2374
        %v2376 = vand.u32 %v2115, 4294901760
        %v2377 = vsub.f32 %v2115, %v2376
        %v2378 = vand.u32 %v2377, 4294901760
        %2379 = vmatpush.msra.mxu0 %v2378
        %v2380 = vand.u32 %v2114, 4294901760
        %v2381 = vsub.f32 %v2114, %v2380
        %v2382 = vand.u32 %v2381, 4294901760
        %2383 = vmatpush.msra.mxu0 %v2382
        %v2384 = vand.u32 %v2149, 4294901760
        %2385 = vmatmul.f32.gmra.mxu0 %v2384
        %v2386 = vpop.f32.mrf.mxu0
        %v2387 = vadd.f32 %v2336, %v2386
        %v2388 = vand.u32 %v2152, 4294901760
        %2389 = vmatmul.f32.gmra.mxu0 %v2388
        %v2390 = vpop.f32.mrf.mxu0
        %v2391 = vadd.f32 %v2342, %v2390
        %v2392 = vand.u32 %v2155, 4294901760
        %2393 = vmatmul.f32.gmra.mxu0 %v2392
        %v2394 = vpop.f32.mrf.mxu0
        %v2395 = vadd.f32 %v2348, %v2394
        %v2396 = vand.u32 %v2158, 4294901760
        %2397 = vmatmul.f32.gmra.mxu0 %v2396
        %v2398 = vpop.f32.mrf.mxu0
        %v2399 = vadd.f32 %v2354, %v2398
        %2400 = vdwg.mxu0
        %2401 = vmatpush.msra.mxu0 0.0
        %2402 = vmatpush.msra.mxu0 0.0
        %2403 = vmatpush.msra.mxu0 0.0
        %2404 = vmatpush.msra.mxu0 0.0
        %2405 = vmatpush.msra.mxu0 0.0
        %2406 = vmatpush.msra.mxu0 0.0
        %2407 = vmatpush.msra.mxu0 0.0
        %2408 = vmatpush.msra.mxu0 0.0
        %2409 = vmatpush.msra.mxu0 0.0
        %2410 = vmatpush.msra.mxu0 0.0
        %2411 = vmatpush.msra.mxu0 0.0
        %2412 = vmatpush.msra.mxu0 0.0
        %v2413 = vand.u32 %v2117, 4294901760
        %2414 = vmatpush.msra.mxu0 %v2413
        %v2415 = vand.u32 %v2116, 4294901760
        %2416 = vmatpush.msra.mxu0 %v2415
        %v2417 = vand.u32 %v2115, 4294901760
        %2418 = vmatpush.msra.mxu0 %v2417
        %v2419 = vand.u32 %v2114, 4294901760
        %2420 = vmatpush.msra.mxu0 %v2419
        %v2421 = vand.u32 %v2149, 4294901760
        %2422 = vmatmul.f32.gmra.mxu0 %v2421
        %v2423 = vpop.f32.mrf.mxu0
        %v2424 = vadd.f32 %v2387, %v2423
        %v2425 = vand.u32 %v2152, 4294901760
        %2426 = vmatmul.f32.gmra.mxu0 %v2425
        %v2427 = vpop.f32.mrf.mxu0
        %v2428 = vadd.f32 %v2391, %v2427
        %v2429 = vand.u32 %v2155, 4294901760
        %2430 = vmatmul.f32.gmra.mxu0 %v2429
        %v2431 = vpop.f32.mrf.mxu0
        %v2432 = vadd.f32 %v2395, %v2431
        %v2433 = vand.u32 %v2158, 4294901760
        %2434 = vmatmul.f32.gmra.mxu0 %v2433
        %v2435 = vpop.f32.mrf.mxu0
        %v2436 = vadd.f32 %v2399, %v2435
        %2437 = vdwg.mxu0
        %v2438 = vtanh.pop %v2424
        %v2439 = vtanh.pop %v2428
        %v2440 = vtanh.pop %v2432
        %v2441 = vtanh.pop %v2436
        %v2442 = vadd.f32 %v2114, %v2438
        %v2443 = vadd.f32 %v2115, %v2439
        %v2444 = vadd.f32 %v2116, %v2440
        %v2445 = vadd.f32 %v2117, %v2441
        %s2446 = scalar_lea.vmem %s1, 224
        %v2447 = vld [vmem:[%s2446] sm:$0xff]
        %v2448 = vld [vmem:[%s2446 + $0x8] sm:$0xff]
        %s2449 = scalar_lea.vmem %s2, 224
        %v2450 = vld [vmem:[%s2449] sm:$0xff]
        %v2451 = vld [vmem:[%s2449 + $0x8] sm:$0xff]
        %2453 = vset.pattern.permute.xlu0 0
        %2454 = vperm.xlu0 %2453, %v2450
        %v2455 = vpop.permute.xlu0 %2454
        %2458 = vset.pattern.permute.xlu0 0
        %2459 = vperm.xlu0 %2458, %v2451
        %v2460 = vpop.permute.xlu0 %2459
        %v2463 = vsel %vm519, %v2447, 0
        %v2466 = vsel %vm519, %v2448, 0
        %2468 = vmatpush.msra.mxu0 0.0
        %2469 = vmatpush.msra.mxu0 0.0
        %2470 = vmatpush.msra.mxu0 0.0
        %2471 = vmatpush.msra.mxu0 0.0
        %2472 = vmatpush.msra.mxu0 0.0
        %2473 = vmatpush.msra.mxu0 0.0
        %2474 = vmatpush.msra.mxu0 0.0
        %2475 = vmatpush.msra.mxu0 0.0
        %2476 = vmatpush.msra.mxu0 0.0
        %2477 = vmatpush.msra.mxu0 0.0
        %2478 = vmatpush.msra.mxu0 0.0
        %2479 = vmatpush.msra.mxu0 0.0
        %v2480 = vand.u32 %v2445, 4294901760
        %2481 = vmatpush.msra.mxu0 %v2480
        %v2482 = vand.u32 %v2444, 4294901760
        %2483 = vmatpush.msra.mxu0 %v2482
        %v2484 = vand.u32 %v2443, 4294901760
        %2485 = vmatpush.msra.mxu0 %v2484
        %v2486 = vand.u32 %v2442, 4294901760
        %2487 = vmatpush.msra.mxu0 %v2486
        %v2488 = vand.u32 %v2463, 4294901760
        %v2489 = vsub.f32 %v2463, %v2488
        %v2490 = vand.u32 %v2489, 4294901760
        %v2491 = vsub.f32 %v2489, %v2490
        %v2492 = vand.u32 %v2491, 4294901760
        %2493 = vmatmul.f32.gmra.mxu0 %v2492
        %v2494 = vpop.f32.mrf.mxu0
        %v2495 = vadd.f32 %v2455, %v2494
        %v2496 = vand.u32 %v2466, 4294901760
        %v2497 = vsub.f32 %v2466, %v2496
        %v2498 = vand.u32 %v2497, 4294901760
        %v2499 = vsub.f32 %v2497, %v2498
        %v2500 = vand.u32 %v2499, 4294901760
        %2501 = vmatmul.f32.gmra.mxu0 %v2500
        %v2502 = vpop.f32.mrf.mxu0
        %v2503 = vadd.f32 %v2460, %v2502
        %2504 = vdwg.mxu0
        %2505 = vmatpush.msra.mxu0 0.0
        %2506 = vmatpush.msra.mxu0 0.0
        %2507 = vmatpush.msra.mxu0 0.0
        %2508 = vmatpush.msra.mxu0 0.0
        %2509 = vmatpush.msra.mxu0 0.0
        %2510 = vmatpush.msra.mxu0 0.0
        %2511 = vmatpush.msra.mxu0 0.0
        %2512 = vmatpush.msra.mxu0 0.0
        %2513 = vmatpush.msra.mxu0 0.0
        %2514 = vmatpush.msra.mxu0 0.0
        %2515 = vmatpush.msra.mxu0 0.0
        %2516 = vmatpush.msra.mxu0 0.0
        %v2517 = vand.u32 %v2445, 4294901760
        %v2518 = vsub.f32 %v2445, %v2517
        %v2519 = vand.u32 %v2518, 4294901760
        %v2520 = vsub.f32 %v2518, %v2519
        %v2521 = vand.u32 %v2520, 4294901760
        %2522 = vmatpush.msra.mxu0 %v2521
        %v2523 = vand.u32 %v2444, 4294901760
        %v2524 = vsub.f32 %v2444, %v2523
        %v2525 = vand.u32 %v2524, 4294901760
        %v2526 = vsub.f32 %v2524, %v2525
        %v2527 = vand.u32 %v2526, 4294901760
        %2528 = vmatpush.msra.mxu0 %v2527
        %v2529 = vand.u32 %v2443, 4294901760
        %v2530 = vsub.f32 %v2443, %v2529
        %v2531 = vand.u32 %v2530, 4294901760
        %v2532 = vsub.f32 %v2530, %v2531
        %v2533 = vand.u32 %v2532, 4294901760
        %2534 = vmatpush.msra.mxu0 %v2533
        %v2535 = vand.u32 %v2442, 4294901760
        %v2536 = vsub.f32 %v2442, %v2535
        %v2537 = vand.u32 %v2536, 4294901760
        %v2538 = vsub.f32 %v2536, %v2537
        %v2539 = vand.u32 %v2538, 4294901760
        %2540 = vmatpush.msra.mxu0 %v2539
        %v2541 = vand.u32 %v2463, 4294901760
        %2542 = vmatmul.f32.gmra.mxu0 %v2541
        %v2543 = vpop.f32.mrf.mxu0
        %v2544 = vadd.f32 %v2495, %v2543
        %v2545 = vand.u32 %v2466, 4294901760
        %2546 = vmatmul.f32.gmra.mxu0 %v2545
        %v2547 = vpop.f32.mrf.mxu0
        %v2548 = vadd.f32 %v2503, %v2547
        %2549 = vdwg.mxu0
        %2550 = vmatpush.msra.mxu0 0.0
        %2551 = vmatpush.msra.mxu0 0.0
        %2552 = vmatpush.msra.mxu0 0.0
        %2553 = vmatpush.msra.mxu0 0.0
        %2554 = vmatpush.msra.mxu0 0.0
        %2555 = vmatpush.msra.mxu0 0.0
        %2556 = vmatpush.msra.mxu0 0.0
        %2557 = vmatpush.msra.mxu0 0.0
        %2558 = vmatpush.msra.mxu0 0.0
        %2559 = vmatpush.msra.mxu0 0.0
        %2560 = vmatpush.msra.mxu0 0.0
        %2561 = vmatpush.msra.mxu0 0.0
        %v2562 = vand.u32 %v2445, 4294901760
        %v2563 = vsub.f32 %v2445, %v2562
        %2564 = vmatpush.msra.mxu0 %v2563
        %v2565 = vand.u32 %v2444, 4294901760
        %v2566 = vsub.f32 %v2444, %v2565
        %2567 = vmatpush.msra.mxu0 %v2566
        %v2568 = vand.u32 %v2443, 4294901760
        %v2569 = vsub.f32 %v2443, %v2568
        %2570 = vmatpush.msra.mxu0 %v2569
        %v2571 = vand.u32 %v2442, 4294901760
        %v2572 = vsub.f32 %v2442, %v2571
        %2573 = vmatpush.msra.mxu0 %v2572
        %v2574 = vand.u32 %v2463, 4294901760
        %v2575 = vsub.f32 %v2463, %v2574
        %2576 = vmatmul.f32.gmra.mxu0 %v2575
        %v2577 = vpop.f32.mrf.mxu0
        %v2578 = vadd.f32 %v2544, %v2577
        %v2579 = vand.u32 %v2466, 4294901760
        %v2580 = vsub.f32 %v2466, %v2579
        %2581 = vmatmul.f32.gmra.mxu0 %v2580
        %v2582 = vpop.f32.mrf.mxu0
        %v2583 = vadd.f32 %v2548, %v2582
        %2584 = vdwg.mxu0
        %2585 = vmatpush.msra.mxu0 0.0
        %2586 = vmatpush.msra.mxu0 0.0
        %2587 = vmatpush.msra.mxu0 0.0
        %2588 = vmatpush.msra.mxu0 0.0
        %2589 = vmatpush.msra.mxu0 0.0
        %2590 = vmatpush.msra.mxu0 0.0
        %2591 = vmatpush.msra.mxu0 0.0
        %2592 = vmatpush.msra.mxu0 0.0
        %2593 = vmatpush.msra.mxu0 0.0
        %2594 = vmatpush.msra.mxu0 0.0
        %2595 = vmatpush.msra.mxu0 0.0
        %2596 = vmatpush.msra.mxu0 0.0
        %v2597 = vand.u32 %v2445, 4294901760
        %2598 = vmatpush.msra.mxu0 %v2597
        %v2599 = vand.u32 %v2444, 4294901760
        %2600 = vmatpush.msra.mxu0 %v2599
        %v2601 = vand.u32 %v2443, 4294901760
        %2602 = vmatpush.msra.mxu0 %v2601
        %v2603 = vand.u32 %v2442, 4294901760
        %2604 = vmatpush.msra.mxu0 %v2603
        %v2605 = vand.u32 %v2463, 4294901760
        %v2606 = vsub.f32 %v2463, %v2605
        %v2607 = vand.u32 %v2606, 4294901760
        %2608 = vmatmul.f32.gmra.mxu0 %v2607
        %v2609 = vpop.f32.mrf.mxu0
        %v2610 = vadd.f32 %v2578, %v2609
        %v2611 = vand.u32 %v2466, 4294901760
        %v2612 = vsub.f32 %v2466, %v2611
        %v2613 = vand.u32 %v2612, 4294901760
        %2614 = vmatmul.f32.gmra.mxu0 %v2613
        %v2615 = vpop.f32.mrf.mxu0
        %v2616 = vadd.f32 %v2583, %v2615
        %2617 = vdwg.mxu0
        %2618 = vmatpush.msra.mxu0 0.0
        %2619 = vmatpush.msra.mxu0 0.0
        %2620 = vmatpush.msra.mxu0 0.0
        %2621 = vmatpush.msra.mxu0 0.0
        %2622 = vmatpush.msra.mxu0 0.0
        %2623 = vmatpush.msra.mxu0 0.0
        %2624 = vmatpush.msra.mxu0 0.0
        %2625 = vmatpush.msra.mxu0 0.0
        %2626 = vmatpush.msra.mxu0 0.0
        %2627 = vmatpush.msra.mxu0 0.0
        %2628 = vmatpush.msra.mxu0 0.0
        %2629 = vmatpush.msra.mxu0 0.0
        %v2630 = vand.u32 %v2445, 4294901760
        %v2631 = vsub.f32 %v2445, %v2630
        %v2632 = vand.u32 %v2631, 4294901760
        %2633 = vmatpush.msra.mxu0 %v2632
        %v2634 = vand.u32 %v2444, 4294901760
        %v2635 = vsub.f32 %v2444, %v2634
        %v2636 = vand.u32 %v2635, 4294901760
        %2637 = vmatpush.msra.mxu0 %v2636
        %v2638 = vand.u32 %v2443, 4294901760
        %v2639 = vsub.f32 %v2443, %v2638
        %v2640 = vand.u32 %v2639, 4294901760
        %2641 = vmatpush.msra.mxu0 %v2640
        %v2642 = vand.u32 %v2442, 4294901760
        %v2643 = vsub.f32 %v2442, %v2642
        %v2644 = vand.u32 %v2643, 4294901760
        %2645 = vmatpush.msra.mxu0 %v2644
        %v2646 = vand.u32 %v2463, 4294901760
        %2647 = vmatmul.f32.gmra.mxu0 %v2646
        %v2648 = vpop.f32.mrf.mxu0
        %v2649 = vadd.f32 %v2610, %v2648
        %v2650 = vand.u32 %v2466, 4294901760
        %2651 = vmatmul.f32.gmra.mxu0 %v2650
        %v2652 = vpop.f32.mrf.mxu0
        %v2653 = vadd.f32 %v2616, %v2652
        %2654 = vdwg.mxu0
        %2655 = vmatpush.msra.mxu0 0.0
        %2656 = vmatpush.msra.mxu0 0.0
        %2657 = vmatpush.msra.mxu0 0.0
        %2658 = vmatpush.msra.mxu0 0.0
        %2659 = vmatpush.msra.mxu0 0.0
        %2660 = vmatpush.msra.mxu0 0.0
        %2661 = vmatpush.msra.mxu0 0.0
        %2662 = vmatpush.msra.mxu0 0.0
        %2663 = vmatpush.msra.mxu0 0.0
        %2664 = vmatpush.msra.mxu0 0.0
        %2665 = vmatpush.msra.mxu0 0.0
        %2666 = vmatpush.msra.mxu0 0.0
        %v2667 = vand.u32 %v2445, 4294901760
        %2668 = vmatpush.msra.mxu0 %v2667
        %v2669 = vand.u32 %v2444, 4294901760
        %2670 = vmatpush.msra.mxu0 %v2669
        %v2671 = vand.u32 %v2443, 4294901760
        %2672 = vmatpush.msra.mxu0 %v2671
        %v2673 = vand.u32 %v2442, 4294901760
        %2674 = vmatpush.msra.mxu0 %v2673
        %v2675 = vand.u32 %v2463, 4294901760
        %2676 = vmatmul.f32.gmra.mxu0 %v2675
        %v2677 = vpop.f32.mrf.mxu0
        %v2678 = vadd.f32 %v2649, %v2677
        %v2679 = vand.u32 %v2466, 4294901760
        %2680 = vmatmul.f32.gmra.mxu0 %v2679
        %v2681 = vpop.f32.mrf.mxu0
        %v2682 = vadd.f32 %v2653, %v2681
        %2683 = vdwg.mxu0
        %2684 = vst [vmem:[%s189] sm:$0xff] %v2678
        %2685 = vst [vmem:[%s189 + $0x8] sm:$0xff] %v2682
        %s2686 = sand.u32 %s96, 1
        %s2687 = scalar_lea.sflag [#allocation4], %s2686
        %s2688 = sand.u32 %s96, 1
        %s2689 = smul.addr %s2688, 16
        %s2690 = scalar_lea.vmem [#allocation5], %s2689
        // Predicated region
        $region37: #{tpu_custom_call.1} parent=31 // pred_check
          %p2691 = pneg %p106
        $region38: #{tpu_custom_call.1} parent=31 // pred_check_branch
          %2693 = sbr.rel (%p2691) target = $region40
        $region39: #{tpu_custom_call.1} parent=31 // pred_region
          %2695 = vsyncadd %s2687, 0
          %s2696 = smul.addr %s20, 8
          %s2697 = scalar_lea.hbm %s3, %s2696
          %s2698 = sshll.u32 %s2690, 4
          %s2699 = int_to_ptr.vmem [resolvable:$true] %s2698
          %s2700 = sshll.u32 %s2697, 4
          %s2701 = int_to_ptr.hbm [resolvable:$true] %s2700
          %2706 = dma.vmem_to_hbm [thread:$0]  %s2699, 256, %s2701, %s2687, 128, 256, 8
        $region40: #{tpu_custom_call.1} parent=31 // pred_fallthru
          _
      $region32: #{tpu_custom_call.1} parent=5 // pred_fallthru
        _
      %p2707 = scmp.le.s32.totalorder 2, %s15
      // Predicated region
      $region41: #{tpu_custom_call.1} parent=5 // pred_check
        %p2708 = pneg %p2707
      $region42: #{tpu_custom_call.1} parent=5 // pred_check_branch
        %2710 = sbr.rel (%p2708) target = $region44
      $region43: #{tpu_custom_call.1} parent=5 // pred_region
        %s2711 = ssub.s32 %s15, 2
        // Predicated region
        $region45: #{tpu_custom_call.1} parent=43 // pred_check
          %p2712 = pneg %p112
        $region46: #{tpu_custom_call.1} parent=43 // pred_check_branch
          %2714 = sbr.rel (%p2712) target = $region48
        $region47: #{tpu_custom_call.1} parent=43 // pred_region
          %s2715 = sand.u32 %s97, 1
          %s2716 = scalar_lea.sflag [#allocation4], %s2715
          %s2717 = sand.u32 %s97, 1
          %s2718 = smul.addr %s2717, 16
          %s2719 = scalar_lea.vmem [#allocation5], %s2718
          %2721 = dma.done %s2716, 256
        $region48: #{tpu_custom_call.1} parent=43 // pred_fallthru
          _
      $region44: #{tpu_custom_call.1} parent=5 // pred_fallthru
        _
    $region6: #{tpu_custom_call.1} parent=1 // loop_footer
      %s19 = sadd.s32 1, %s15
    $region7: #{tpu_custom_call.1} parent=1 // loop_footer_branch
      %14 = sbr.rel target = $region3
    $region8: #{tpu_custom_call.1} parent=1 // loop_exit
      _
    %2722 = vsyncpa [#allocation3], 1
    %s2723 = scalar_lea.sflag [#allocation3], 1
    %2724 = vsyncpa %s2723, 1
    %2725 = vsyncpa [#allocation4], 1
    %s2726 = scalar_lea.sflag [#allocation4], 1
    %2727 = vsyncpa %s2726, 1

</llo_original>
